<compile_context>
chip_gen: v7x
topology: tpu7x:2x2x1
jax: 0.10.0
libtpu: 0.0.40
codegen_flags: <defaults>
</compile_context>

<pallas_src>
import jax
import jax.numpy as jnp
from jax.experimental import pallas as pl
from jax.experimental.pallas import tpu as pltpu


def _res_edge_conv_kernel(x_ref, xn_ref, wcat_ref, wd_ref, be_ref, bn_ref, o_ref):
    # x_ref   : [tn, Cin]          target node features x_i
    # xn_ref  : [Kp, tn, Cin]      gathered neighbor features x_j (neighbor-major)
    # wcat_ref: [Cin, 2*Coutp]     [edge_nn W_i  |  residual nn W] fused along Cout
    # wd_ref  : [Cin, Coutp]       edge_nn weight slice applied to (x_j - x_i)
    # be_ref  : [1, Coutp]         edge_nn bias (zero-padded)
    # bn_ref  : [1, Coutp]         residual nn bias (zero-padded)
    xi = x_ref[...]                                    # [tn, Cin]
    xn = xn_ref[...]                                   # [Kp, tn, Cin]
    kp, tn, cin = xn.shape
    coutp = wd_ref.shape[-1]

    # Fused node-side matmul: one MXU pass gives both the x_i term of edge_nn and
    # the residual nn(x) term.
    base = jnp.dot(xi, wcat_ref[...],
                   preferred_element_type=jnp.float32)  # [tn, 2*Coutp]
    xi_term = base[:, :coutp] + be_ref[...]             # edge_nn x_i contribution + b
    x_out = base[:, coutp:] + bn_ref[...]               # residual nn(x)

    # edge_nn(concat([x_i, x_j - x_i])) = x_i @ W_i + (x_j - x_i) @ W_d + b
    diff = xn - xi[None, :, :]                           # [Kp, tn, Cin]
    dterm = jnp.dot(diff.reshape(kp * tn, cin), wd_ref[...],
                    preferred_element_type=jnp.float32)  # [Kp*tn, Coutp]
    dterm = dterm.reshape(kp, tn, coutp)                 # layout-clean (tn % 8 == 0)

    # aggr='max' over neighbors as an unrolled chain of full-tile VALU maxima
    # (each dterm[kk] is a contiguous [tn, Coutp] slab -> no XLU reduce needed).
    edge_out = jnp.maximum(xi_term + dterm[0], 0.0)      # ReLU inside edge_nn
    for kk in range(1, kp):
        edge_out = jnp.maximum(edge_out, jnp.maximum(xi_term + dterm[kk], 0.0))

    o_ref[...] = (edge_out + x_out).astype(o_ref.dtype)  # residual add


def _pick_tn(N, Kp, Cin, Coutp, vmem_budget_bytes=40 * 1024 * 1024):
    """Largest node tile (multiple of 8, divisor of N) fitting the pipelined budget."""
    # dominant double-buffered streams per grid step: x_nbr, x, out
    bytes_per_row = (Kp * Cin + Cin + Coutp) * 4 * 2
    cap = max(8, vmem_budget_bytes // bytes_per_row)
    tn = 8
    for cand in (1024, 512, 256, 128, 64, 32, 16, 8):
        if cand <= cap and N % cand == 0:
            tn = cand
            break
    # keep the grid >= 2 when possible so v7x's two TensorCores both get work
    if tn == N and (N // 2) % 8 == 0:
        tn = N // 2
    return tn


def res_edge_conv(x, edge_index, we, be, wn, bn, k, *, tn=None):
    """x: [N, Cin] float32, edge_index: [2, N*k] int32 (src row 0, dst row 1)."""
    N, Cin = x.shape
    Cout = wn.shape[1]
    E = edge_index.shape[1]
    # Dense-kNN assumption: every target node has exactly k incoming edges.
    assert E == N * k, "expected a dense kNN graph with exactly k in-edges per node"
    assert N % 8 == 0, "pad the node count to a multiple of 8"

    Kp = ((k + 7) // 8) * 8          # sublane-aligned neighbor count
    Coutp = ((Cout + 127) // 128) * 128  # lane-dense output channels

    if tn is None:
        tn = _pick_tn(N, Kp, Cin, Coutp)
    assert N % tn == 0

    # --- glue: edge_index -> dense neighbor table + gather -------------------
    src, dst = edge_index[0], edge_index[1]
    order = jnp.argsort(dst, stable=True)          # group edges by target node
    nbr = src[order].reshape(N, k)                 # [N, k] neighbor ids
    reps = -(-Kp // k)
    nbr_p = jnp.tile(nbr, (1, reps))[:, :Kp]       # pad K by duplicating real
    #                                                neighbors (safe under max aggr)
    x_nbr = x[nbr_p.T]                             # [Kp, N, Cin], neighbor-major

    # --- weight prep: split edge_nn weight, pad Cout, fuse the x_i matmuls ---
    pad_c = Coutp - Cout
    we_i = jnp.pad(we[:Cin], ((0, 0), (0, pad_c)))     # applied to x_i
    we_d = jnp.pad(we[Cin:], ((0, 0), (0, pad_c)))     # applied to (x_j - x_i)
    wn_p = jnp.pad(wn, ((0, 0), (0, pad_c)))
    be_p = jnp.pad(be, ((0, 0), (0, pad_c)))
    bn_p = jnp.pad(bn, ((0, 0), (0, pad_c)))
    wcat = jnp.concatenate([we_i, wn_p], axis=1)       # [Cin, 2*Coutp]

    grid = (N // tn,)
    out_p = pl.pallas_call(
        _res_edge_conv_kernel,
        out_shape=jax.ShapeDtypeStruct((N, Coutp), x.dtype),
        grid_spec=pltpu.PrefetchScalarGridSpec(
            num_scalar_prefetch=0,
            grid=grid,
            in_specs=[
                pl.BlockSpec((tn, Cin), lambda i: (i, 0)),
                pl.BlockSpec((Kp, tn, Cin), lambda i: (0, i, 0)),
                pl.BlockSpec((Cin, 2 * Coutp), lambda i: (0, 0)),
                pl.BlockSpec((Cin, Coutp), lambda i: (0, 0)),
                pl.BlockSpec((1, Coutp), lambda i: (0, 0)),
                pl.BlockSpec((1, Coutp), lambda i: (0, 0)),
            ],
            out_specs=pl.BlockSpec((tn, Coutp), lambda i: (i, 0)),
        ),
        compiler_params=pltpu.CompilerParams(
            dimension_semantics=("parallel",),
            vmem_limit_bytes=48 * 1024 * 1024),
    )(x, x_nbr, wcat, we_d, be_p, bn_p)

    return out_p[:, :Cout]


if __name__ == "__main__":
    N, Cin, Cout, K = 256, 32, 32, 7

    key = jax.random.PRNGKey(0)
    k1, k2, k3, k4, k5 = jax.random.split(key, 5)
    x = jax.random.normal(k1, (N, Cin), dtype=jnp.float32)

    # knn-style ring graph: node i receives messages from nodes i+1 .. i+K (mod N)
    ids = jnp.arange(N, dtype=jnp.int32)
    nbrs = (ids[:, None] + jnp.arange(1, K + 1, dtype=jnp.int32)[None, :]) % N
    dst = jnp.repeat(ids, K)
    src = nbrs.reshape(-1)
    edge_index = jnp.stack([src, dst])             # [2, E], E = N*K

    # deterministic parameter init (synthetic weights, no checkpoint)
    we = 0.1 * jax.random.normal(k2, (2 * Cin, Cout), dtype=jnp.float32)
    be = 0.1 * jax.random.normal(k3, (1, Cout), dtype=jnp.float32)
    wn = 0.1 * jax.random.normal(k4, (Cin, Cout), dtype=jnp.float32)
    bn = 0.1 * jax.random.normal(k5, (1, Cout), dtype=jnp.float32)

    out = res_edge_conv(x, edge_index, we, be, wn, bn, K)
    jax.block_until_ready(out)

    # pure-JAX reference (matches PyG EdgeConv message + max aggregation)
    xi = x[dst]
    xj = x[src]
    msg = jnp.maximum(jnp.concatenate([xi, xj - xi], axis=-1) @ we + be, 0.0)
    edge_out_ref = jax.ops.segment_max(msg, dst, num_segments=N)
    ref = edge_out_ref + (x @ wn + bn)
    assert jnp.allclose(out, ref, atol=1e-4, rtol=1e-4), "mismatch vs reference"

    print("KERNEL_OK")
</pallas_src>

<mosaic_0001>
module attributes {stable_mosaic.version = 11 : i64} {
  func.func @_res_edge_conv_kernel(%arg0: i32, %arg1: memref<128x32xf32, #tpu.memory_space<vmem>>, %arg2: memref<8x128x32xf32, #tpu.memory_space<vmem>>, %arg3: memref<32x256xf32, #tpu.memory_space<vmem>>, %arg4: memref<32x128xf32, #tpu.memory_space<vmem>>, %arg5: memref<1x128xf32, #tpu.memory_space<vmem>>, %arg6: memref<1x128xf32, #tpu.memory_space<vmem>>, %arg7: memref<128x128xf32, #tpu.memory_space<vmem>>) attributes {dimension_semantics = [#tpu.dimension_semantics<parallel>], iteration_bounds = array<i64: 2>, scalar_prefetch = 0 : i64, scratch_operands = 0 : i64, tpu.core_type = #tpu.core_type<tc>, window_params = [{transform_indices = @transform_0, window_bounds = array<i64: 128, 32>}, {transform_indices = @transform_1, window_bounds = array<i64: 8, 128, 32>}, {pipeline_mode = #tpu.pipeline_mode<synchronous>, transform_indices = @transform_2, window_bounds = array<i64: 32, 256>}, {pipeline_mode = #tpu.pipeline_mode<synchronous>, transform_indices = @transform_3, window_bounds = array<i64: 32, 128>}, {pipeline_mode = #tpu.pipeline_mode<synchronous>, transform_indices = @transform_4, window_bounds = array<i64: 1, 128>}, {pipeline_mode = #tpu.pipeline_mode<synchronous>, transform_indices = @transform_5, window_bounds = array<i64: 1, 128>}, {transform_indices = @transform_6, window_bounds = array<i64: 128, 128>}]} {
    %c0 = arith.constant 0 : index
    %c0_0 = arith.constant 0 : index
    %0 = vector.load %arg1[%c0, %c0_0] : memref<128x32xf32, #tpu.memory_space<vmem>>, vector<128x32xf32>
    %c0_1 = arith.constant 0 : index
    %c0_2 = arith.constant 0 : index
    %c0_3 = arith.constant 0 : index
    %1 = vector.load %arg2[%c0_1, %c0_2, %c0_3] : memref<8x128x32xf32, #tpu.memory_space<vmem>>, vector<8x128x32xf32>
    %c0_4 = arith.constant 0 : index
    %c0_5 = arith.constant 0 : index
    %2 = vector.load %arg3[%c0_4, %c0_5] : memref<32x256xf32, #tpu.memory_space<vmem>>, vector<32x256xf32>
    %cst = arith.constant dense<0.000000e+00> : vector<128x256xf32>
    %3 = tpu.matmul %0, %2, %cst {dimension_numbers = #tpu.dot_dimension_numbers<[1], [0], [0], [1], [0, 0, 1, 1], [], []>} : vector<128x32xf32>, vector<32x256xf32>, vector<128x256xf32> -> vector<128x256xf32>
    %4 = vector.extract_strided_slice %3 {offsets = [0, 0], sizes = [128, 128], strides = [1, 1]} : vector<128x256xf32> to vector<128x128xf32>
    %c0_6 = arith.constant 0 : index
    %c0_7 = arith.constant 0 : index
    %5 = vector.load %arg5[%c0_6, %c0_7] : memref<1x128xf32, #tpu.memory_space<vmem>>, vector<1x128xf32>
    %6 = vector.broadcast %5 : vector<1x128xf32> to vector<128x128xf32>
    %7 = arith.addf %4, %6 : vector<128x128xf32>
    %8 = vector.extract_strided_slice %3 {offsets = [0, 128], sizes = [128, 128], strides = [1, 1]} : vector<128x256xf32> to vector<128x128xf32>
    %c0_8 = arith.constant 0 : index
    %c0_9 = arith.constant 0 : index
    %9 = vector.load %arg6[%c0_8, %c0_9] : memref<1x128xf32, #tpu.memory_space<vmem>>, vector<1x128xf32>
    %10 = vector.broadcast %9 : vector<1x128xf32> to vector<128x128xf32>
    %11 = arith.addf %8, %10 : vector<128x128xf32>
    %12 = vector.shape_cast %0 : vector<128x32xf32> to vector<1x128x32xf32>
    %13 = vector.broadcast %12 : vector<1x128x32xf32> to vector<8x128x32xf32>
    %14 = arith.subf %1, %13 : vector<8x128x32xf32>
    %15 = vector.shape_cast %14 : vector<8x128x32xf32> to vector<1024x32xf32>
    %c0_10 = arith.constant 0 : index
    %c0_11 = arith.constant 0 : index
    %16 = vector.load %arg4[%c0_10, %c0_11] : memref<32x128xf32, #tpu.memory_space<vmem>>, vector<32x128xf32>
    %cst_12 = arith.constant dense<0.000000e+00> : vector<1024x128xf32>
    %17 = tpu.matmul %15, %16, %cst_12 {dimension_numbers = #tpu.dot_dimension_numbers<[1], [0], [0], [1], [0, 0, 1, 1], [], []>} : vector<1024x32xf32>, vector<32x128xf32>, vector<1024x128xf32> -> vector<1024x128xf32>
    %18 = vector.shape_cast %17 : vector<1024x128xf32> to vector<8x128x128xf32>
    %19 = vector.extract_strided_slice %18 {offsets = [0, 0, 0], sizes = [1, 128, 128], strides = [1, 1, 1]} : vector<8x128x128xf32> to vector<1x128x128xf32>
    %20 = vector.shape_cast %19 : vector<1x128x128xf32> to vector<128x128xf32>
    %21 = arith.addf %7, %20 : vector<128x128xf32>
    %cst_13 = arith.constant 0.000000e+00 : f32
    %22 = vector.broadcast %cst_13 : f32 to vector<128x128xf32>
    %23 = arith.maximumf %21, %22 : vector<128x128xf32>
    %24 = vector.extract_strided_slice %18 {offsets = [1, 0, 0], sizes = [1, 128, 128], strides = [1, 1, 1]} : vector<8x128x128xf32> to vector<1x128x128xf32>
    %25 = vector.shape_cast %24 : vector<1x128x128xf32> to vector<128x128xf32>
    %26 = arith.addf %7, %25 : vector<128x128xf32>
    %cst_14 = arith.constant 0.000000e+00 : f32
    %27 = vector.broadcast %cst_14 : f32 to vector<128x128xf32>
    %28 = arith.maximumf %26, %27 : vector<128x128xf32>
    %29 = arith.maximumf %23, %28 : vector<128x128xf32>
    %30 = vector.extract_strided_slice %18 {offsets = [2, 0, 0], sizes = [1, 128, 128], strides = [1, 1, 1]} : vector<8x128x128xf32> to vector<1x128x128xf32>
    %31 = vector.shape_cast %30 : vector<1x128x128xf32> to vector<128x128xf32>
    %32 = arith.addf %7, %31 : vector<128x128xf32>
    %cst_15 = arith.constant 0.000000e+00 : f32
    %33 = vector.broadcast %cst_15 : f32 to vector<128x128xf32>
    %34 = arith.maximumf %32, %33 : vector<128x128xf32>
    %35 = arith.maximumf %29, %34 : vector<128x128xf32>
    %36 = vector.extract_strided_slice %18 {offsets = [3, 0, 0], sizes = [1, 128, 128], strides = [1, 1, 1]} : vector<8x128x128xf32> to vector<1x128x128xf32>
    %37 = vector.shape_cast %36 : vector<1x128x128xf32> to vector<128x128xf32>
    %38 = arith.addf %7, %37 : vector<128x128xf32>
    %cst_16 = arith.constant 0.000000e+00 : f32
    %39 = vector.broadcast %cst_16 : f32 to vector<128x128xf32>
    %40 = arith.maximumf %38, %39 : vector<128x128xf32>
    %41 = arith.maximumf %35, %40 : vector<128x128xf32>
    %42 = vector.extract_strided_slice %18 {offsets = [4, 0, 0], sizes = [1, 128, 128], strides = [1, 1, 1]} : vector<8x128x128xf32> to vector<1x128x128xf32>
    %43 = vector.shape_cast %42 : vector<1x128x128xf32> to vector<128x128xf32>
    %44 = arith.addf %7, %43 : vector<128x128xf32>
    %cst_17 = arith.constant 0.000000e+00 : f32
    %45 = vector.broadcast %cst_17 : f32 to vector<128x128xf32>
    %46 = arith.maximumf %44, %45 : vector<128x128xf32>
    %47 = arith.maximumf %41, %46 : vector<128x128xf32>
    %48 = vector.extract_strided_slice %18 {offsets = [5, 0, 0], sizes = [1, 128, 128], strides = [1, 1, 1]} : vector<8x128x128xf32> to vector<1x128x128xf32>
    %49 = vector.shape_cast %48 : vector<1x128x128xf32> to vector<128x128xf32>
    %50 = arith.addf %7, %49 : vector<128x128xf32>
    %cst_18 = arith.constant 0.000000e+00 : f32
    %51 = vector.broadcast %cst_18 : f32 to vector<128x128xf32>
    %52 = arith.maximumf %50, %51 : vector<128x128xf32>
    %53 = arith.maximumf %47, %52 : vector<128x128xf32>
    %54 = vector.extract_strided_slice %18 {offsets = [6, 0, 0], sizes = [1, 128, 128], strides = [1, 1, 1]} : vector<8x128x128xf32> to vector<1x128x128xf32>
    %55 = vector.shape_cast %54 : vector<1x128x128xf32> to vector<128x128xf32>
    %56 = arith.addf %7, %55 : vector<128x128xf32>
    %cst_19 = arith.constant 0.000000e+00 : f32
    %57 = vector.broadcast %cst_19 : f32 to vector<128x128xf32>
    %58 = arith.maximumf %56, %57 : vector<128x128xf32>
    %59 = arith.maximumf %53, %58 : vector<128x128xf32>
    %60 = vector.extract_strided_slice %18 {offsets = [7, 0, 0], sizes = [1, 128, 128], strides = [1, 1, 1]} : vector<8x128x128xf32> to vector<1x128x128xf32>
    %61 = vector.shape_cast %60 : vector<1x128x128xf32> to vector<128x128xf32>
    %62 = arith.addf %7, %61 : vector<128x128xf32>
    %cst_20 = arith.constant 0.000000e+00 : f32
    %63 = vector.broadcast %cst_20 : f32 to vector<128x128xf32>
    %64 = arith.maximumf %62, %63 : vector<128x128xf32>
    %65 = arith.maximumf %59, %64 : vector<128x128xf32>
    %66 = arith.addf %65, %11 : vector<128x128xf32>
    %c0_21 = arith.constant 0 : index
    %c0_22 = arith.constant 0 : index
    %67 = vector.load %arg7[%c0_21, %c0_22] : memref<128x128xf32, #tpu.memory_space<vmem>>, vector<128x128xf32>
    tpu.vector_store %arg7[%c0_21, %c0_22], %66 {strides = array<i32>} : memref<128x128xf32, #tpu.memory_space<vmem>>, vector<128x128xf32>,
    return
  }
  func.func @transform_0(%arg0: i32) -> (i32, i32) {
    %c0_i32 = arith.constant 0 : i32
    %c0_i32_0 = arith.constant 0 : i32
    return %arg0, %c0_i32 : i32, i32
  }
  func.func @transform_1(%arg0: i32) -> (i32, i32, i32) {
    %c0_i32 = arith.constant 0 : i32
    %c0_i32_0 = arith.constant 0 : i32
    %c0_i32_1 = arith.constant 0 : i32
    return %c0_i32, %arg0, %c0_i32_0 : i32, i32, i32
  }
  func.func @transform_2(%arg0: i32) -> (i32, i32) {
    %c0_i32 = arith.constant 0 : i32
    %c0_i32_0 = arith.constant 0 : i32
    %c0_i32_1 = arith.constant 0 : i32
    return %c0_i32, %c0_i32_0 : i32, i32
  }
  func.func @transform_3(%arg0: i32) -> (i32, i32) {
    %c0_i32 = arith.constant 0 : i32
    %c0_i32_0 = arith.constant 0 : i32
    %c0_i32_1 = arith.constant 0 : i32
    return %c0_i32, %c0_i32_0 : i32, i32
  }
  func.func @transform_4(%arg0: i32) -> (i32, i32) {
    %c0_i32 = arith.constant 0 : i32
    %c0_i32_0 = arith.constant 0 : i32
    %c0_i32_1 = arith.constant 0 : i32
    return %c0_i32, %c0_i32_0 : i32, i32
  }
  func.func @transform_5(%arg0: i32) -> (i32, i32) {
    %c0_i32 = arith.constant 0 : i32
    %c0_i32_0 = arith.constant 0 : i32
    %c0_i32_1 = arith.constant 0 : i32
    return %c0_i32, %c0_i32_0 : i32, i32
  }
  func.func @transform_6(%arg0: i32) -> (i32, i32) {
    %c0_i32 = arith.constant 0 : i32
    %c0_i32_0 = arith.constant 0 : i32
    return %arg0, %c0_i32 : i32, i32
  }
}

</mosaic_0001>

<llo_original>
// kernel: tpu_custom_call.1
$region0: #{tpu_custom_call.1}
  #allocation0 [shape = 'u32[]', space=smem, size = 0x4, offset = 0x4, fixed_abs, tag = 'smem constant byte address 0x4 - core index']
  #allocation1 [shape = 'u32[144,128]{1,0:T(1,128)}', space=vmem, size = 0x12000, scoped, tag = 'internal scratch']
  %s0 = inlined_call_operand.vmem [shape: f32[256,32], index: 0, kind: input, shape index: {}]
  %s1 = inlined_call_operand.vmem [shape: f32[8,256,32], index: 1, kind: input, shape index: {}]
  %s2 = inlined_call_operand.vmem [shape: f32[32,256], index: 2, kind: input, shape index: {}]
  %s3 = inlined_call_operand.vmem [shape: f32[32,128], index: 3, kind: input, shape index: {}]
  %s4 = inlined_call_operand.vmem [shape: f32[1,128], index: 4, kind: input, shape index: {}]
  %s5 = inlined_call_operand.vmem [shape: f32[1,128], index: 5, kind: input, shape index: {}]
  %s6 = inlined_call_operand.hbm [shape: f32[256,128], index: 6, kind: output, shape index: {}]
  %s7 = sld [smem:[#allocation0]]
  $region95: #{tpu_custom_call.1} parent=0
    _
  %s9 = ssub.s32 1, %s7
  %s10 = scalar_select 0, %s9, %s7
  $region1: #{tpu_custom_call.1} parent=0
    #allocation2 [shape = 'u8[1048576]{0}', space=vmem, size = 0x100000, scoped, tag = 'input window, operand 1']
    #allocation3 [shape = 'u8[131072]{0}', space=vmem, size = 0x20000, scoped, tag = 'output window, operand 0']
    #allocation4 [shape = 's32[2]{0}', space=sflag, size = 0x8, scoped, tag = 'scoped memory for tpu_custom_call.1']
    %11 = vsyncpa [#allocation4], 0
    %s12 = scalar_lea.sflag [#allocation4], 1
    %13 = vsyncpa %s12, 0
    loop: start=0, step=1, limit=4
    $region2: #{tpu_custom_call.1} parent=1 // loop_pre_header
      _
    $region3: #{tpu_custom_call.1} parent=1 // loop_header
      %s15 = sphi 0, %s19
      %p16 = scmp.ge.s32.totalorder %s15, 4
      %s25 = sphi 0, %s27
      %s28 = sphi 0, %s25
      %s29 = sphi 0, %s28
      %s45 = sphi 0, %s29
      %s51 = sphi 0, %s53
      %s54 = sphi 0, %s51
      %s55 = sphi 0, %s54
      %s71 = sphi 0, %s55
      %s75 = sphi 0, %s75
      %s77 = sphi 0, %s75
      %s78 = sphi 0, %s77
      %s92 = sphi 0, %s78
      %s96 = sphi 0, %s96
      %s98 = sphi 0, %s96
      %s99 = sphi 0, %s98
      %s113 = sphi 0, %s99
      %s117 = sphi 0, %s117
      %s119 = sphi 0, %s117
      %s120 = sphi 0, %s119
      %s134 = sphi 0, %s120
      %s138 = sphi 0, %s138
      %s140 = sphi 0, %s138
      %s141 = sphi 0, %s140
      %s155 = sphi 0, %s141
      %s161 = sphi 0, %s163
      %s164 = sphi 0, %s161
      %s165 = sphi 0, %s164
      %s181 = sphi 0, %s165
    $region4: #{tpu_custom_call.1} parent=1 // loop_header_branch
      %18 = sbr.rel (%p16) target = $region8
    $region5: #{tpu_custom_call.1} parent=1 // loop_body
      %s20 = ssub.s32 %s15, 1
      %s21 = ssub.s32 %s15, 2
      %s22 = sadd.s32 %s15, 1
      %s23 = ssub.s32 %s15, %s22
      %p24 = scmp.eq.s32.totalorder %s23, 0
      %s26 = sadd.s32 %s25, 1
      %s27 = scalar_select %p24, %s25, %s26
      %p30 = pneg %p24
      %p31 = scmp.eq.s32.totalorder %s15, 1
      %p32 = por %p30, %p31
      %p33 = scmp.ne.s32.totalorder %s25, %s28
      %p34 = scmp.eq.s32.totalorder %s15, 0
      %p35 = por %p33, %p34
      %p36 = scmp.ne.s32.totalorder %s25, %s28
      %p37 = scmp.eq.s32.totalorder %s20, 1
      %p38 = por %p36, %p37
      %p39 = scmp.ne.s32.totalorder %s28, %s29
      %p40 = scmp.eq.s32.totalorder %s20, 0
      %p41 = por %p39, %p40
      %p42 = scmp.ne.s32.totalorder %s28, %s29
      %p43 = scmp.eq.s32.totalorder %s21, 1
      %p44 = por %p42, %p43
      %p46 = scmp.ne.s32.totalorder %s29, %s45
      %p47 = scmp.eq.s32.totalorder %s21, 0
      %p48 = por %p46, %p47
      %s49 = ssub.s32 %s15, %s22
      %p50 = scmp.eq.s32.totalorder %s49, 0
      %s52 = sadd.s32 %s51, 1
      %s53 = scalar_select %p50, %s51, %s52
      %p56 = pneg %p50
      %p57 = scmp.eq.s32.totalorder %s15, 1
      %p58 = por %p56, %p57
      %p59 = scmp.ne.s32.totalorder %s51, %s54
      %p60 = scmp.eq.s32.totalorder %s15, 0
      %p61 = por %p59, %p60
      %p62 = scmp.ne.s32.totalorder %s51, %s54
      %p63 = scmp.eq.s32.totalorder %s20, 1
      %p64 = por %p62, %p63
      %p65 = scmp.ne.s32.totalorder %s54, %s55
      %p66 = scmp.eq.s32.totalorder %s20, 0
      %p67 = por %p65, %p66
      %p68 = scmp.ne.s32.totalorder %s54, %s55
      %p69 = scmp.eq.s32.totalorder %s21, 1
      %p70 = por %p68, %p69
      %p72 = scmp.ne.s32.totalorder %s55, %s71
      %p73 = scmp.eq.s32.totalorder %s21, 0
      %p74 = por %p72, %p73
      %s76 = sadd.s32 %s75, 1
      %p79 = scmp.eq.s32.totalorder %s15, 1
      %p80 = scmp.ne.s32.totalorder %s75, %s77
      %p81 = scmp.eq.s32.totalorder %s15, 0
      %p82 = por %p80, %p81
      %p83 = scmp.ne.s32.totalorder %s75, %s77
      %p84 = scmp.eq.s32.totalorder %s20, 1
      %p85 = por %p83, %p84
      %p86 = scmp.ne.s32.totalorder %s77, %s78
      %p87 = scmp.eq.s32.totalorder %s20, 0
      %p88 = por %p86, %p87
      %p89 = scmp.ne.s32.totalorder %s77, %s78
      %p90 = scmp.eq.s32.totalorder %s21, 1
      %p91 = por %p89, %p90
      %p93 = scmp.ne.s32.totalorder %s78, %s92
      %p94 = scmp.eq.s32.totalorder %s21, 0
      %p95 = por %p93, %p94
      %s97 = sadd.s32 %s96, 1
      %p100 = scmp.eq.s32.totalorder %s15, 1
      %p101 = scmp.ne.s32.totalorder %s96, %s98
      %p102 = scmp.eq.s32.totalorder %s15, 0
      %p103 = por %p101, %p102
      %p104 = scmp.ne.s32.totalorder %s96, %s98
      %p105 = scmp.eq.s32.totalorder %s20, 1
      %p106 = por %p104, %p105
      %p107 = scmp.ne.s32.totalorder %s98, %s99
      %p108 = scmp.eq.s32.totalorder %s20, 0
      %p109 = por %p107, %p108
      %p110 = scmp.ne.s32.totalorder %s98, %s99
      %p111 = scmp.eq.s32.totalorder %s21, 1
      %p112 = por %p110, %p111
      %p114 = scmp.ne.s32.totalorder %s99, %s113
      %p115 = scmp.eq.s32.totalorder %s21, 0
      %p116 = por %p114, %p115
      %s118 = sadd.s32 %s117, 1
      %p121 = scmp.eq.s32.totalorder %s15, 1
      %p122 = scmp.ne.s32.totalorder %s117, %s119
      %p123 = scmp.eq.s32.totalorder %s15, 0
      %p124 = por %p122, %p123
      %p125 = scmp.ne.s32.totalorder %s117, %s119
      %p126 = scmp.eq.s32.totalorder %s20, 1
      %p127 = por %p125, %p126
      %p128 = scmp.ne.s32.totalorder %s119, %s120
      %p129 = scmp.eq.s32.totalorder %s20, 0
      %p130 = por %p128, %p129
      %p131 = scmp.ne.s32.totalorder %s119, %s120
      %p132 = scmp.eq.s32.totalorder %s21, 1
      %p133 = por %p131, %p132
      %p135 = scmp.ne.s32.totalorder %s120, %s134
      %p136 = scmp.eq.s32.totalorder %s21, 0
      %p137 = por %p135, %p136
      %s139 = sadd.s32 %s138, 1
      %p142 = scmp.eq.s32.totalorder %s15, 1
      %p143 = scmp.ne.s32.totalorder %s138, %s140
      %p144 = scmp.eq.s32.totalorder %s15, 0
      %p145 = por %p143, %p144
      %p146 = scmp.ne.s32.totalorder %s138, %s140
      %p147 = scmp.eq.s32.totalorder %s20, 1
      %p148 = por %p146, %p147
      %p149 = scmp.ne.s32.totalorder %s140, %s141
      %p150 = scmp.eq.s32.totalorder %s20, 0
      %p151 = por %p149, %p150
      %p152 = scmp.ne.s32.totalorder %s140, %s141
      %p153 = scmp.eq.s32.totalorder %s21, 1
      %p154 = por %p152, %p153
      %p156 = scmp.ne.s32.totalorder %s141, %s155
      %p157 = scmp.eq.s32.totalorder %s21, 0
      %p158 = por %p156, %p157
      %s159 = ssub.s32 %s15, %s22
      %p160 = scmp.eq.s32.totalorder %s159, 0
      %s162 = sadd.s32 %s161, 1
      %s163 = scalar_select %p160, %s161, %s162
      %p166 = pneg %p160
      %p167 = scmp.eq.s32.totalorder %s15, 1
      %p168 = por %p166, %p167
      %p169 = scmp.ne.s32.totalorder %s161, %s164
      %p170 = scmp.eq.s32.totalorder %s15, 0
      %p171 = por %p169, %p170
      %p172 = scmp.ne.s32.totalorder %s161, %s164
      %p173 = scmp.eq.s32.totalorder %s20, 1
      %p174 = por %p172, %p173
      %p175 = scmp.ne.s32.totalorder %s164, %s165
      %p176 = scmp.eq.s32.totalorder %s20, 0
      %p177 = por %p175, %p176
      %p178 = scmp.ne.s32.totalorder %s164, %s165
      %p179 = scmp.eq.s32.totalorder %s21, 1
      %p180 = por %p178, %p179
      %p182 = scmp.ne.s32.totalorder %s165, %s181
      %p183 = scmp.eq.s32.totalorder %s21, 0
      %p184 = por %p182, %p183
      %p185 = scmp.le.s32.totalorder 1, %s15
      %p186 = scmp.lt.s32.totalorder %s15, 3
      %p187 = pnand %p185, %p186
      %p188 = pneg %p187
      // Predicated region
      $region9: #{tpu_custom_call.1} parent=5 // pred_check
        _
      $region10: #{tpu_custom_call.1} parent=5 // pred_check_branch
        %190 = sbr.rel (%p187) target = $region12
      $region11: #{tpu_custom_call.1} parent=5 // pred_region
        %s191 = ssub.s32 %s15, 1
        // Predicated region
        $region13: #{tpu_custom_call.1} parent=11 // pred_check
          %p192 = pneg %p88
        $region14: #{tpu_custom_call.1} parent=11 // pred_check_branch
          %194 = sbr.rel (%p192) target = $region16
        $region15: #{tpu_custom_call.1} parent=11 // pred_region
          _
        $region16: #{tpu_custom_call.1} parent=11 // pred_fallthru
          _
        // Predicated region
        $region17: #{tpu_custom_call.1} parent=11 // pred_check
          %p195 = pneg %p109
        $region18: #{tpu_custom_call.1} parent=11 // pred_check_branch
          %197 = sbr.rel (%p195) target = $region20
        $region19: #{tpu_custom_call.1} parent=11 // pred_region
          _
        $region20: #{tpu_custom_call.1} parent=11 // pred_fallthru
          _
        // Predicated region
        $region21: #{tpu_custom_call.1} parent=11 // pred_check
          %p198 = pneg %p130
        $region22: #{tpu_custom_call.1} parent=11 // pred_check_branch
          %200 = sbr.rel (%p198) target = $region24
        $region23: #{tpu_custom_call.1} parent=11 // pred_region
          _
        $region24: #{tpu_custom_call.1} parent=11 // pred_fallthru
          _
        // Predicated region
        $region25: #{tpu_custom_call.1} parent=11 // pred_check
          %p201 = pneg %p151
        $region26: #{tpu_custom_call.1} parent=11 // pred_check_branch
          %203 = sbr.rel (%p201) target = $region28
        $region27: #{tpu_custom_call.1} parent=11 // pred_region
          _
        $region28: #{tpu_custom_call.1} parent=11 // pred_fallthru
          _
      $region12: #{tpu_custom_call.1} parent=5 // pred_fallthru
        _
      %p204 = scmp.lt.s32.totalorder %s15, 2
      // Predicated region
      $region29: #{tpu_custom_call.1} parent=5 // pred_check
        %p205 = pneg %p204
      $region30: #{tpu_custom_call.1} parent=5 // pred_check_branch
        %207 = sbr.rel (%p205) target = $region32
      $region31: #{tpu_custom_call.1} parent=5 // pred_region
        // Predicated region
        $region33: #{tpu_custom_call.1} parent=31 // pred_check
          %p208 = pneg %p35
        $region34: #{tpu_custom_call.1} parent=31 // pred_check_branch
          %210 = sbr.rel (%p208) target = $region36
        $region35: #{tpu_custom_call.1} parent=31 // pred_region
          %s211 = smul.u32 16, %s15
          %p212 = scmp.lt.s32.totalorder %s211, 31
          %s213 = scalar_select %p212, %s211, 31
          %s214 = smul.addr %s213, 8
          %s215 = scalar_lea.vmem %s0, %s214
          %s216 = smul.u32 16, %s15
        $region36: #{tpu_custom_call.1} parent=31 // pred_fallthru
          _
        // Predicated region
        $region37: #{tpu_custom_call.1} parent=31 // pred_check
          %p217 = pneg %p61
        $region38: #{tpu_custom_call.1} parent=31 // pred_check_branch
          %219 = sbr.rel (%p217) target = $region40
        $region39: #{tpu_custom_call.1} parent=31 // pred_region
          %s220 = sand.u32 %s51, 1
          %s221 = sand.u32 %s51, 1
          %s222 = smul.addr %s221, 1024
          %s223 = scalar_lea.vmem [#allocation2], %s222
          %s224 = smul.u32 16, %s15
          %s225 = smul.addr %s224, 8
          %s226 = scalar_lea.vmem %s1, %s225
          // Predicated region
          $region41: #{tpu_custom_call.1} parent=39 // pred_check
            _
          $region42: #{tpu_custom_call.1} parent=39 // pred_check_branch
            %228 = sbr.rel (0) target = $region44
          $region43: #{tpu_custom_call.1} parent=39 // pred_region
            // Predicated region
            $region45: #{tpu_custom_call.1} parent=43 // pred_check
              _
            $region46: #{tpu_custom_call.1} parent=43 // pred_check_branch
              %230 = sbr.rel (0) target = $region48
            $region47: #{tpu_custom_call.1} parent=43 // pred_region
              // Predicated region
              $region60: #{tpu_custom_call.1} parent=47 // pred_check
                _
              $region61: #{tpu_custom_call.1} parent=47 // pred_check_branch
                %499 = sbr.rel (0) target = $region63
              $region62: #{tpu_custom_call.1} parent=47 // pred_region
                loop: start=0, step=1, limit=1
                $region64: #{tpu_custom_call.1} parent=62 // loop_pre_header
                  _
                $region65: #{tpu_custom_call.1} parent=62 // loop_header
                  %s501 = sphi 0, %s505
                  %p502 = scmp.ge.s32.totalorder %s501, 1
                  %s506 = sphi %s226, %s226
                  %s507 = sphi %s223, %s223
                $region66: #{tpu_custom_call.1} parent=62 // loop_header_branch
                  %504 = sbr.rel (%p502) target = $region70
                $region67: #{tpu_custom_call.1} parent=62 // loop_body
                  %v508 = vld [vmem:[%s506] sm:$0xff]
                  %509 = vst [vmem:[%s507] sm:$0xff] %v508
                  %v510 = vld [vmem:[%s506 + $0x8] sm:$0xff]
                  %511 = vst [vmem:[%s507 + $0x8] sm:$0xff] %v510
                  %v512 = vld [vmem:[%s506 + $0x10] sm:$0xff]
                  %513 = vst [vmem:[%s507 + $0x10] sm:$0xff] %v512
                  %v514 = vld [vmem:[%s506 + $0x18] sm:$0xff]
                  %515 = vst [vmem:[%s507 + $0x18] sm:$0xff] %v514
                  %v516 = vld [vmem:[%s506 + $0x20] sm:$0xff]
                  %517 = vst [vmem:[%s507 + $0x20] sm:$0xff] %v516
                  %v518 = vld [vmem:[%s506 + $0x28] sm:$0xff]
                  %519 = vst [vmem:[%s507 + $0x28] sm:$0xff] %v518
                  %v520 = vld [vmem:[%s506 + $0x30] sm:$0xff]
                  %521 = vst [vmem:[%s507 + $0x30] sm:$0xff] %v520
                  %v522 = vld [vmem:[%s506 + $0x38] sm:$0xff]
                  %523 = vst [vmem:[%s507 + $0x38] sm:$0xff] %v522
                  %v524 = vld [vmem:[%s506 + $0x40] sm:$0xff]
                  %525 = vst [vmem:[%s507 + $0x40] sm:$0xff] %v524
                  %v526 = vld [vmem:[%s506 + $0x48] sm:$0xff]
                  %527 = vst [vmem:[%s507 + $0x48] sm:$0xff] %v526
                  %v528 = vld [vmem:[%s506 + $0x50] sm:$0xff]
                  %529 = vst [vmem:[%s507 + $0x50] sm:$0xff] %v528
                  %v530 = vld [vmem:[%s506 + $0x58] sm:$0xff]
                  %531 = vst [vmem:[%s507 + $0x58] sm:$0xff] %v530
                  %v532 = vld [vmem:[%s506 + $0x60] sm:$0xff]
                  %533 = vst [vmem:[%s507 + $0x60] sm:$0xff] %v532
                  %v534 = vld [vmem:[%s506 + $0x68] sm:$0xff]
                  %535 = vst [vmem:[%s507 + $0x68] sm:$0xff] %v534
                  %v536 = vld [vmem:[%s506 + $0x70] sm:$0xff]
                  %537 = vst [vmem:[%s507 + $0x70] sm:$0xff] %v536
                  %v538 = vld [vmem:[%s506 + $0x78] sm:$0xff]
                  %539 = vst [vmem:[%s507 + $0x78] sm:$0xff] %v538
                  %v540 = vld [vmem:[%s506 + $0x100] sm:$0xff]
                  %541 = vst [vmem:[%s507 + $0x80] sm:$0xff] %v540
                  %v542 = vld [vmem:[%s506 + $0x108] sm:$0xff]
                  %543 = vst [vmem:[%s507 + $0x88] sm:$0xff] %v542
                  %v544 = vld [vmem:[%s506 + $0x110] sm:$0xff]
                  %545 = vst [vmem:[%s507 + $0x90] sm:$0xff] %v544
                  %v546 = vld [vmem:[%s506 + $0x118] sm:$0xff]
                  %547 = vst [vmem:[%s507 + $0x98] sm:$0xff] %v546
                  %v548 = vld [vmem:[%s506 + $0x120] sm:$0xff]
                  %549 = vst [vmem:[%s507 + $0xa0] sm:$0xff] %v548
                  %v550 = vld [vmem:[%s506 + $0x128] sm:$0xff]
                  %551 = vst [vmem:[%s507 + $0xa8] sm:$0xff] %v550
                  %v552 = vld [vmem:[%s506 + $0x130] sm:$0xff]
                  %553 = vst [vmem:[%s507 + $0xb0] sm:$0xff] %v552
                  %v554 = vld [vmem:[%s506 + $0x138] sm:$0xff]
                  %555 = vst [vmem:[%s507 + $0xb8] sm:$0xff] %v554
                  %v556 = vld [vmem:[%s506 + $0x140] sm:$0xff]
                  %557 = vst [vmem:[%s507 + $0xc0] sm:$0xff] %v556
                  %v558 = vld [vmem:[%s506 + $0x148] sm:$0xff]
                  %559 = vst [vmem:[%s507 + $0xc8] sm:$0xff] %v558
                  %v560 = vld [vmem:[%s506 + $0x150] sm:$0xff]
                  %561 = vst [vmem:[%s507 + $0xd0] sm:$0xff] %v560
                  %v562 = vld [vmem:[%s506 + $0x158] sm:$0xff]
                  %563 = vst [vmem:[%s507 + $0xd8] sm:$0xff] %v562
                  %v564 = vld [vmem:[%s506 + $0x160] sm:$0xff]
                  %565 = vst [vmem:[%s507 + $0xe0] sm:$0xff] %v564
                  %v566 = vld [vmem:[%s506 + $0x168] sm:$0xff]
                  %567 = vst [vmem:[%s507 + $0xe8] sm:$0xff] %v566
                  %v568 = vld [vmem:[%s506 + $0x170] sm:$0xff]
                  %569 = vst [vmem:[%s507 + $0xf0] sm:$0xff] %v568
                  %v570 = vld [vmem:[%s506 + $0x178] sm:$0xff]
                  %571 = vst [vmem:[%s507 + $0xf8] sm:$0xff] %v570
                  %v572 = vld [vmem:[%s506 + $0x200] sm:$0xff]
                  %573 = vst [vmem:[%s507 + $0x100] sm:$0xff] %v572
                  %v574 = vld [vmem:[%s506 + $0x208] sm:$0xff]
                  %575 = vst [vmem:[%s507 + $0x108] sm:$0xff] %v574
                  %v576 = vld [vmem:[%s506 + $0x210] sm:$0xff]
                  %577 = vst [vmem:[%s507 + $0x110] sm:$0xff] %v576
                  %v578 = vld [vmem:[%s506 + $0x218] sm:$0xff]
                  %579 = vst [vmem:[%s507 + $0x118] sm:$0xff] %v578
                  %v580 = vld [vmem:[%s506 + $0x220] sm:$0xff]
                  %581 = vst [vmem:[%s507 + $0x120] sm:$0xff] %v580
                  %v582 = vld [vmem:[%s506 + $0x228] sm:$0xff]
                  %583 = vst [vmem:[%s507 + $0x128] sm:$0xff] %v582
                  %v584 = vld [vmem:[%s506 + $0x230] sm:$0xff]
                  %585 = vst [vmem:[%s507 + $0x130] sm:$0xff] %v584
                  %v586 = vld [vmem:[%s506 + $0x238] sm:$0xff]
                  %587 = vst [vmem:[%s507 + $0x138] sm:$0xff] %v586
                  %v588 = vld [vmem:[%s506 + $0x240] sm:$0xff]
                  %589 = vst [vmem:[%s507 + $0x140] sm:$0xff] %v588
                  %v590 = vld [vmem:[%s506 + $0x248] sm:$0xff]
                  %591 = vst [vmem:[%s507 + $0x148] sm:$0xff] %v590
                  %v592 = vld [vmem:[%s506 + $0x250] sm:$0xff]
                  %593 = vst [vmem:[%s507 + $0x150] sm:$0xff] %v592
                  %v594 = vld [vmem:[%s506 + $0x258] sm:$0xff]
                  %595 = vst [vmem:[%s507 + $0x158] sm:$0xff] %v594
                  %v596 = vld [vmem:[%s506 + $0x260] sm:$0xff]
                  %597 = vst [vmem:[%s507 + $0x160] sm:$0xff] %v596
                  %v598 = vld [vmem:[%s506 + $0x268] sm:$0xff]
                  %599 = vst [vmem:[%s507 + $0x168] sm:$0xff] %v598
                  %v600 = vld [vmem:[%s506 + $0x270] sm:$0xff]
                  %601 = vst [vmem:[%s507 + $0x170] sm:$0xff] %v600
                  %v602 = vld [vmem:[%s506 + $0x278] sm:$0xff]
                  %603 = vst [vmem:[%s507 + $0x178] sm:$0xff] %v602
                  %v604 = vld [vmem:[%s506 + $0x300] sm:$0xff]
                  %605 = vst [vmem:[%s507 + $0x180] sm:$0xff] %v604
                  %v606 = vld [vmem:[%s506 + $0x308] sm:$0xff]
                  %607 = vst [vmem:[%s507 + $0x188] sm:$0xff] %v606
                  %v608 = vld [vmem:[%s506 + $0x310] sm:$0xff]
                  %609 = vst [vmem:[%s507 + $0x190] sm:$0xff] %v608
                  %v610 = vld [vmem:[%s506 + $0x318] sm:$0xff]
                  %611 = vst [vmem:[%s507 + $0x198] sm:$0xff] %v610
                  %v612 = vld [vmem:[%s506 + $0x320] sm:$0xff]
                  %613 = vst [vmem:[%s507 + $0x1a0] sm:$0xff] %v612
                  %v614 = vld [vmem:[%s506 + $0x328] sm:$0xff]
                  %615 = vst [vmem:[%s507 + $0x1a8] sm:$0xff] %v614
                  %v616 = vld [vmem:[%s506 + $0x330] sm:$0xff]
                  %617 = vst [vmem:[%s507 + $0x1b0] sm:$0xff] %v616
                  %v618 = vld [vmem:[%s506 + $0x338] sm:$0xff]
                  %619 = vst [vmem:[%s507 + $0x1b8] sm:$0xff] %v618
                  %v620 = vld [vmem:[%s506 + $0x340] sm:$0xff]
                  %621 = vst [vmem:[%s507 + $0x1c0] sm:$0xff] %v620
                  %v622 = vld [vmem:[%s506 + $0x348] sm:$0xff]
                  %623 = vst [vmem:[%s507 + $0x1c8] sm:$0xff] %v622
                  %v624 = vld [vmem:[%s506 + $0x350] sm:$0xff]
                  %625 = vst [vmem:[%s507 + $0x1d0] sm:$0xff] %v624
                  %v626 = vld [vmem:[%s506 + $0x358] sm:$0xff]
                  %627 = vst [vmem:[%s507 + $0x1d8] sm:$0xff] %v626
                  %v628 = vld [vmem:[%s506 + $0x360] sm:$0xff]
                  %629 = vst [vmem:[%s507 + $0x1e0] sm:$0xff] %v628
                  %v630 = vld [vmem:[%s506 + $0x368] sm:$0xff]
                  %631 = vst [vmem:[%s507 + $0x1e8] sm:$0xff] %v630
                  %v632 = vld [vmem:[%s506 + $0x370] sm:$0xff]
                  %633 = vst [vmem:[%s507 + $0x1f0] sm:$0xff] %v632
                  %v634 = vld [vmem:[%s506 + $0x378] sm:$0xff]
                  %635 = vst [vmem:[%s507 + $0x1f8] sm:$0xff] %v634
                  %v636 = vld [vmem:[%s506 + $0x400] sm:$0xff]
                  %637 = vst [vmem:[%s507 + $0x200] sm:$0xff] %v636
                  %v638 = vld [vmem:[%s506 + $0x408] sm:$0xff]
                  %639 = vst [vmem:[%s507 + $0x208] sm:$0xff] %v638
                  %v640 = vld [vmem:[%s506 + $0x410] sm:$0xff]
                  %641 = vst [vmem:[%s507 + $0x210] sm:$0xff] %v640
                  %v642 = vld [vmem:[%s506 + $0x418] sm:$0xff]
                  %643 = vst [vmem:[%s507 + $0x218] sm:$0xff] %v642
                  %v644 = vld [vmem:[%s506 + $0x420] sm:$0xff]
                  %645 = vst [vmem:[%s507 + $0x220] sm:$0xff] %v644
                  %v646 = vld [vmem:[%s506 + $0x428] sm:$0xff]
                  %647 = vst [vmem:[%s507 + $0x228] sm:$0xff] %v646
                  %v648 = vld [vmem:[%s506 + $0x430] sm:$0xff]
                  %649 = vst [vmem:[%s507 + $0x230] sm:$0xff] %v648
                  %v650 = vld [vmem:[%s506 + $0x438] sm:$0xff]
                  %651 = vst [vmem:[%s507 + $0x238] sm:$0xff] %v650
                  %v652 = vld [vmem:[%s506 + $0x440] sm:$0xff]
                  %653 = vst [vmem:[%s507 + $0x240] sm:$0xff] %v652
                  %v654 = vld [vmem:[%s506 + $0x448] sm:$0xff]
                  %655 = vst [vmem:[%s507 + $0x248] sm:$0xff] %v654
                  %v656 = vld [vmem:[%s506 + $0x450] sm:$0xff]
                  %657 = vst [vmem:[%s507 + $0x250] sm:$0xff] %v656
                  %v658 = vld [vmem:[%s506 + $0x458] sm:$0xff]
                  %659 = vst [vmem:[%s507 + $0x258] sm:$0xff] %v658
                  %v660 = vld [vmem:[%s506 + $0x460] sm:$0xff]
                  %661 = vst [vmem:[%s507 + $0x260] sm:$0xff] %v660
                  %v662 = vld [vmem:[%s506 + $0x468] sm:$0xff]
                  %663 = vst [vmem:[%s507 + $0x268] sm:$0xff] %v662
                  %v664 = vld [vmem:[%s506 + $0x470] sm:$0xff]
                  %665 = vst [vmem:[%s507 + $0x270] sm:$0xff] %v664
                  %v666 = vld [vmem:[%s506 + $0x478] sm:$0xff]
                  %667 = vst [vmem:[%s507 + $0x278] sm:$0xff] %v666
                  %v668 = vld [vmem:[%s506 + $0x500] sm:$0xff]
                  %669 = vst [vmem:[%s507 + $0x280] sm:$0xff] %v668
                  %v670 = vld [vmem:[%s506 + $0x508] sm:$0xff]
                  %671 = vst [vmem:[%s507 + $0x288] sm:$0xff] %v670
                  %v672 = vld [vmem:[%s506 + $0x510] sm:$0xff]
                  %673 = vst [vmem:[%s507 + $0x290] sm:$0xff] %v672
                  %v674 = vld [vmem:[%s506 + $0x518] sm:$0xff]
                  %675 = vst [vmem:[%s507 + $0x298] sm:$0xff] %v674
                  %v676 = vld [vmem:[%s506 + $0x520] sm:$0xff]
                  %677 = vst [vmem:[%s507 + $0x2a0] sm:$0xff] %v676
                  %v678 = vld [vmem:[%s506 + $0x528] sm:$0xff]
                  %679 = vst [vmem:[%s507 + $0x2a8] sm:$0xff] %v678
                  %v680 = vld [vmem:[%s506 + $0x530] sm:$0xff]
                  %681 = vst [vmem:[%s507 + $0x2b0] sm:$0xff] %v680
                  %v682 = vld [vmem:[%s506 + $0x538] sm:$0xff]
                  %683 = vst [vmem:[%s507 + $0x2b8] sm:$0xff] %v682
                  %v684 = vld [vmem:[%s506 + $0x540] sm:$0xff]
                  %685 = vst [vmem:[%s507 + $0x2c0] sm:$0xff] %v684
                  %v686 = vld [vmem:[%s506 + $0x548] sm:$0xff]
                  %687 = vst [vmem:[%s507 + $0x2c8] sm:$0xff] %v686
                  %v688 = vld [vmem:[%s506 + $0x550] sm:$0xff]
                  %689 = vst [vmem:[%s507 + $0x2d0] sm:$0xff] %v688
                  %v690 = vld [vmem:[%s506 + $0x558] sm:$0xff]
                  %691 = vst [vmem:[%s507 + $0x2d8] sm:$0xff] %v690
                  %v692 = vld [vmem:[%s506 + $0x560] sm:$0xff]
                  %693 = vst [vmem:[%s507 + $0x2e0] sm:$0xff] %v692
                  %v694 = vld [vmem:[%s506 + $0x568] sm:$0xff]
                  %695 = vst [vmem:[%s507 + $0x2e8] sm:$0xff] %v694
                  %v696 = vld [vmem:[%s506 + $0x570] sm:$0xff]
                  %697 = vst [vmem:[%s507 + $0x2f0] sm:$0xff] %v696
                  %v698 = vld [vmem:[%s506 + $0x578] sm:$0xff]
                  %699 = vst [vmem:[%s507 + $0x2f8] sm:$0xff] %v698
                  %v700 = vld [vmem:[%s506 + $0x600] sm:$0xff]
                  %701 = vst [vmem:[%s507 + $0x300] sm:$0xff] %v700
                  %v702 = vld [vmem:[%s506 + $0x608] sm:$0xff]
                  %703 = vst [vmem:[%s507 + $0x308] sm:$0xff] %v702
                  %v704 = vld [vmem:[%s506 + $0x610] sm:$0xff]
                  %705 = vst [vmem:[%s507 + $0x310] sm:$0xff] %v704
                  %v706 = vld [vmem:[%s506 + $0x618] sm:$0xff]
                  %707 = vst [vmem:[%s507 + $0x318] sm:$0xff] %v706
                  %v708 = vld [vmem:[%s506 + $0x620] sm:$0xff]
                  %709 = vst [vmem:[%s507 + $0x320] sm:$0xff] %v708
                  %v710 = vld [vmem:[%s506 + $0x628] sm:$0xff]
                  %711 = vst [vmem:[%s507 + $0x328] sm:$0xff] %v710
                  %v712 = vld [vmem:[%s506 + $0x630] sm:$0xff]
                  %713 = vst [vmem:[%s507 + $0x330] sm:$0xff] %v712
                  %v714 = vld [vmem:[%s506 + $0x638] sm:$0xff]
                  %715 = vst [vmem:[%s507 + $0x338] sm:$0xff] %v714
                  %v716 = vld [vmem:[%s506 + $0x640] sm:$0xff]
                  %717 = vst [vmem:[%s507 + $0x340] sm:$0xff] %v716
                  %v718 = vld [vmem:[%s506 + $0x648] sm:$0xff]
                  %719 = vst [vmem:[%s507 + $0x348] sm:$0xff] %v718
                  %v720 = vld [vmem:[%s506 + $0x650] sm:$0xff]
                  %721 = vst [vmem:[%s507 + $0x350] sm:$0xff] %v720
                  %v722 = vld [vmem:[%s506 + $0x658] sm:$0xff]
                  %723 = vst [vmem:[%s507 + $0x358] sm:$0xff] %v722
                  %v724 = vld [vmem:[%s506 + $0x660] sm:$0xff]
                  %725 = vst [vmem:[%s507 + $0x360] sm:$0xff] %v724
                  %v726 = vld [vmem:[%s506 + $0x668] sm:$0xff]
                  %727 = vst [vmem:[%s507 + $0x368] sm:$0xff] %v726
                  %v728 = vld [vmem:[%s506 + $0x670] sm:$0xff]
                  %729 = vst [vmem:[%s507 + $0x370] sm:$0xff] %v728
                  %v730 = vld [vmem:[%s506 + $0x678] sm:$0xff]
                  %731 = vst [vmem:[%s507 + $0x378] sm:$0xff] %v730
                  %v732 = vld [vmem:[%s506 + $0x700] sm:$0xff]
                  %733 = vst [vmem:[%s507 + $0x380] sm:$0xff] %v732
                  %v734 = vld [vmem:[%s506 + $0x708] sm:$0xff]
                  %735 = vst [vmem:[%s507 + $0x388] sm:$0xff] %v734
                  %v736 = vld [vmem:[%s506 + $0x710] sm:$0xff]
                  %737 = vst [vmem:[%s507 + $0x390] sm:$0xff] %v736
                  %v738 = vld [vmem:[%s506 + $0x718] sm:$0xff]
                  %739 = vst [vmem:[%s507 + $0x398] sm:$0xff] %v738
                  %v740 = vld [vmem:[%s506 + $0x720] sm:$0xff]
                  %741 = vst [vmem:[%s507 + $0x3a0] sm:$0xff] %v740
                  %v742 = vld [vmem:[%s506 + $0x728] sm:$0xff]
                  %743 = vst [vmem:[%s507 + $0x3a8] sm:$0xff] %v742
                  %v744 = vld [vmem:[%s506 + $0x730] sm:$0xff]
                  %745 = vst [vmem:[%s507 + $0x3b0] sm:$0xff] %v744
                  %v746 = vld [vmem:[%s506 + $0x738] sm:$0xff]
                  %747 = vst [vmem:[%s507 + $0x3b8] sm:$0xff] %v746
                  %v748 = vld [vmem:[%s506 + $0x740] sm:$0xff]
                  %749 = vst [vmem:[%s507 + $0x3c0] sm:$0xff] %v748
                  %v750 = vld [vmem:[%s506 + $0x748] sm:$0xff]
                  %751 = vst [vmem:[%s507 + $0x3c8] sm:$0xff] %v750
                  %v752 = vld [vmem:[%s506 + $0x750] sm:$0xff]
                  %753 = vst [vmem:[%s507 + $0x3d0] sm:$0xff] %v752
                  %v754 = vld [vmem:[%s506 + $0x758] sm:$0xff]
                  %755 = vst [vmem:[%s507 + $0x3d8] sm:$0xff] %v754
                  %v756 = vld [vmem:[%s506 + $0x760] sm:$0xff]
                  %757 = vst [vmem:[%s507 + $0x3e0] sm:$0xff] %v756
                  %v758 = vld [vmem:[%s506 + $0x768] sm:$0xff]
                  %759 = vst [vmem:[%s507 + $0x3e8] sm:$0xff] %v758
                  %v760 = vld [vmem:[%s506 + $0x770] sm:$0xff]
                  %761 = vst [vmem:[%s507 + $0x3f0] sm:$0xff] %v760
                  %v762 = vld [vmem:[%s506 + $0x778] sm:$0xff]
                  %763 = vst [vmem:[%s507 + $0x3f8] sm:$0xff] %v762
                $region68: #{tpu_custom_call.1} parent=62 // loop_footer
                  %s505 = sadd.s32 1, %s501
                $region69: #{tpu_custom_call.1} parent=62 // loop_footer_branch
                  %500 = sbr.rel target = $region65
                $region70: #{tpu_custom_call.1} parent=62 // loop_exit
                  _
              $region63: #{tpu_custom_call.1} parent=47 // pred_fallthru
                _
              // Predicated region
              $region71: #{tpu_custom_call.1} parent=47 // pred_check
                _
              $region72: #{tpu_custom_call.1} parent=47 // pred_check_branch
                %765 = sbr.rel target = $region74
              $region73: #{tpu_custom_call.1} parent=47 // pred_region
                _
              $region74: #{tpu_custom_call.1} parent=47 // pred_fallthru
                _
            $region48: #{tpu_custom_call.1} parent=43 // pred_fallthru
              _
            // Predicated region
            $region49: #{tpu_custom_call.1} parent=43 // pred_check
              _
            $region50: #{tpu_custom_call.1} parent=43 // pred_check_branch
              %232 = sbr.rel target = $region52
            $region51: #{tpu_custom_call.1} parent=43 // pred_region
              loop: start=0, step=1, limit=1
              $region53: #{tpu_custom_call.1} parent=51 // loop_pre_header
                _
              $region54: #{tpu_custom_call.1} parent=51 // loop_header
                %s235 = sphi 0, %s239
                %p236 = scmp.ge.s32.totalorder %s235, 1
                %s240 = sphi %s226, %s226
                %s241 = sphi %s223, %s223
              $region55: #{tpu_custom_call.1} parent=51 // loop_header_branch
                %238 = sbr.rel (%p236) target = $region59
              $region56: #{tpu_custom_call.1} parent=51 // loop_body
                %v242 = vld [vmem:[%s240] sm:$0xff]
                %243 = vst [vmem:[%s241] sm:$0xff] %v242
                %v244 = vld [vmem:[%s240 + $0x8] sm:$0xff]
                %245 = vst [vmem:[%s241 + $0x8] sm:$0xff] %v244
                %v246 = vld [vmem:[%s240 + $0x10] sm:$0xff]
                %247 = vst [vmem:[%s241 + $0x10] sm:$0xff] %v246
                %v248 = vld [vmem:[%s240 + $0x18] sm:$0xff]
                %249 = vst [vmem:[%s241 + $0x18] sm:$0xff] %v248
                %v250 = vld [vmem:[%s240 + $0x20] sm:$0xff]
                %251 = vst [vmem:[%s241 + $0x20] sm:$0xff] %v250
                %v252 = vld [vmem:[%s240 + $0x28] sm:$0xff]
                %253 = vst [vmem:[%s241 + $0x28] sm:$0xff] %v252
                %v254 = vld [vmem:[%s240 + $0x30] sm:$0xff]
                %255 = vst [vmem:[%s241 + $0x30] sm:$0xff] %v254
                %v256 = vld [vmem:[%s240 + $0x38] sm:$0xff]
                %257 = vst [vmem:[%s241 + $0x38] sm:$0xff] %v256
                %v258 = vld [vmem:[%s240 + $0x40] sm:$0xff]
                %259 = vst [vmem:[%s241 + $0x40] sm:$0xff] %v258
                %v260 = vld [vmem:[%s240 + $0x48] sm:$0xff]
                %261 = vst [vmem:[%s241 + $0x48] sm:$0xff] %v260
                %v262 = vld [vmem:[%s240 + $0x50] sm:$0xff]
                %263 = vst [vmem:[%s241 + $0x50] sm:$0xff] %v262
                %v264 = vld [vmem:[%s240 + $0x58] sm:$0xff]
                %265 = vst [vmem:[%s241 + $0x58] sm:$0xff] %v264
                %v266 = vld [vmem:[%s240 + $0x60] sm:$0xff]
                %267 = vst [vmem:[%s241 + $0x60] sm:$0xff] %v266
                %v268 = vld [vmem:[%s240 + $0x68] sm:$0xff]
                %269 = vst [vmem:[%s241 + $0x68] sm:$0xff] %v268
                %v270 = vld [vmem:[%s240 + $0x70] sm:$0xff]
                %271 = vst [vmem:[%s241 + $0x70] sm:$0xff] %v270
                %v272 = vld [vmem:[%s240 + $0x78] sm:$0xff]
                %273 = vst [vmem:[%s241 + $0x78] sm:$0xff] %v272
                %v274 = vld [vmem:[%s240 + $0x100] sm:$0xff]
                %275 = vst [vmem:[%s241 + $0x80] sm:$0xff] %v274
                %v276 = vld [vmem:[%s240 + $0x108] sm:$0xff]
                %277 = vst [vmem:[%s241 + $0x88] sm:$0xff] %v276
                %v278 = vld [vmem:[%s240 + $0x110] sm:$0xff]
                %279 = vst [vmem:[%s241 + $0x90] sm:$0xff] %v278
                %v280 = vld [vmem:[%s240 + $0x118] sm:$0xff]
                %281 = vst [vmem:[%s241 + $0x98] sm:$0xff] %v280
                %v282 = vld [vmem:[%s240 + $0x120] sm:$0xff]
                %283 = vst [vmem:[%s241 + $0xa0] sm:$0xff] %v282
                %v284 = vld [vmem:[%s240 + $0x128] sm:$0xff]
                %285 = vst [vmem:[%s241 + $0xa8] sm:$0xff] %v284
                %v286 = vld [vmem:[%s240 + $0x130] sm:$0xff]
                %287 = vst [vmem:[%s241 + $0xb0] sm:$0xff] %v286
                %v288 = vld [vmem:[%s240 + $0x138] sm:$0xff]
                %289 = vst [vmem:[%s241 + $0xb8] sm:$0xff] %v288
                %v290 = vld [vmem:[%s240 + $0x140] sm:$0xff]
                %291 = vst [vmem:[%s241 + $0xc0] sm:$0xff] %v290
                %v292 = vld [vmem:[%s240 + $0x148] sm:$0xff]
                %293 = vst [vmem:[%s241 + $0xc8] sm:$0xff] %v292
                %v294 = vld [vmem:[%s240 + $0x150] sm:$0xff]
                %295 = vst [vmem:[%s241 + $0xd0] sm:$0xff] %v294
                %v296 = vld [vmem:[%s240 + $0x158] sm:$0xff]
                %297 = vst [vmem:[%s241 + $0xd8] sm:$0xff] %v296
                %v298 = vld [vmem:[%s240 + $0x160] sm:$0xff]
                %299 = vst [vmem:[%s241 + $0xe0] sm:$0xff] %v298
                %v300 = vld [vmem:[%s240 + $0x168] sm:$0xff]
                %301 = vst [vmem:[%s241 + $0xe8] sm:$0xff] %v300
                %v302 = vld [vmem:[%s240 + $0x170] sm:$0xff]
                %303 = vst [vmem:[%s241 + $0xf0] sm:$0xff] %v302
                %v304 = vld [vmem:[%s240 + $0x178] sm:$0xff]
                %305 = vst [vmem:[%s241 + $0xf8] sm:$0xff] %v304
                %v306 = vld [vmem:[%s240 + $0x200] sm:$0xff]
                %307 = vst [vmem:[%s241 + $0x100] sm:$0xff] %v306
                %v308 = vld [vmem:[%s240 + $0x208] sm:$0xff]
                %309 = vst [vmem:[%s241 + $0x108] sm:$0xff] %v308
                %v310 = vld [vmem:[%s240 + $0x210] sm:$0xff]
                %311 = vst [vmem:[%s241 + $0x110] sm:$0xff] %v310
                %v312 = vld [vmem:[%s240 + $0x218] sm:$0xff]
                %313 = vst [vmem:[%s241 + $0x118] sm:$0xff] %v312
                %v314 = vld [vmem:[%s240 + $0x220] sm:$0xff]
                %315 = vst [vmem:[%s241 + $0x120] sm:$0xff] %v314
                %v316 = vld [vmem:[%s240 + $0x228] sm:$0xff]
                %317 = vst [vmem:[%s241 + $0x128] sm:$0xff] %v316
                %v318 = vld [vmem:[%s240 + $0x230] sm:$0xff]
                %319 = vst [vmem:[%s241 + $0x130] sm:$0xff] %v318
                %v320 = vld [vmem:[%s240 + $0x238] sm:$0xff]
                %321 = vst [vmem:[%s241 + $0x138] sm:$0xff] %v320
                %v322 = vld [vmem:[%s240 + $0x240] sm:$0xff]
                %323 = vst [vmem:[%s241 + $0x140] sm:$0xff] %v322
                %v324 = vld [vmem:[%s240 + $0x248] sm:$0xff]
                %325 = vst [vmem:[%s241 + $0x148] sm:$0xff] %v324
                %v326 = vld [vmem:[%s240 + $0x250] sm:$0xff]
                %327 = vst [vmem:[%s241 + $0x150] sm:$0xff] %v326
                %v328 = vld [vmem:[%s240 + $0x258] sm:$0xff]
                %329 = vst [vmem:[%s241 + $0x158] sm:$0xff] %v328
                %v330 = vld [vmem:[%s240 + $0x260] sm:$0xff]
                %331 = vst [vmem:[%s241 + $0x160] sm:$0xff] %v330
                %v332 = vld [vmem:[%s240 + $0x268] sm:$0xff]
                %333 = vst [vmem:[%s241 + $0x168] sm:$0xff] %v332
                %v334 = vld [vmem:[%s240 + $0x270] sm:$0xff]
                %335 = vst [vmem:[%s241 + $0x170] sm:$0xff] %v334
                %v336 = vld [vmem:[%s240 + $0x278] sm:$0xff]
                %337 = vst [vmem:[%s241 + $0x178] sm:$0xff] %v336
                %v338 = vld [vmem:[%s240 + $0x300] sm:$0xff]
                %339 = vst [vmem:[%s241 + $0x180] sm:$0xff] %v338
                %v340 = vld [vmem:[%s240 + $0x308] sm:$0xff]
                %341 = vst [vmem:[%s241 + $0x188] sm:$0xff] %v340
                %v342 = vld [vmem:[%s240 + $0x310] sm:$0xff]
                %343 = vst [vmem:[%s241 + $0x190] sm:$0xff] %v342
                %v344 = vld [vmem:[%s240 + $0x318] sm:$0xff]
                %345 = vst [vmem:[%s241 + $0x198] sm:$0xff] %v344
                %v346 = vld [vmem:[%s240 + $0x320] sm:$0xff]
                %347 = vst [vmem:[%s241 + $0x1a0] sm:$0xff] %v346
                %v348 = vld [vmem:[%s240 + $0x328] sm:$0xff]
                %349 = vst [vmem:[%s241 + $0x1a8] sm:$0xff] %v348
                %v350 = vld [vmem:[%s240 + $0x330] sm:$0xff]
                %351 = vst [vmem:[%s241 + $0x1b0] sm:$0xff] %v350
                %v352 = vld [vmem:[%s240 + $0x338] sm:$0xff]
                %353 = vst [vmem:[%s241 + $0x1b8] sm:$0xff] %v352
                %v354 = vld [vmem:[%s240 + $0x340] sm:$0xff]
                %355 = vst [vmem:[%s241 + $0x1c0] sm:$0xff] %v354
                %v356 = vld [vmem:[%s240 + $0x348] sm:$0xff]
                %357 = vst [vmem:[%s241 + $0x1c8] sm:$0xff] %v356
                %v358 = vld [vmem:[%s240 + $0x350] sm:$0xff]
                %359 = vst [vmem:[%s241 + $0x1d0] sm:$0xff] %v358
                %v360 = vld [vmem:[%s240 + $0x358] sm:$0xff]
                %361 = vst [vmem:[%s241 + $0x1d8] sm:$0xff] %v360
                %v362 = vld [vmem:[%s240 + $0x360] sm:$0xff]
                %363 = vst [vmem:[%s241 + $0x1e0] sm:$0xff] %v362
                %v364 = vld [vmem:[%s240 + $0x368] sm:$0xff]
                %365 = vst [vmem:[%s241 + $0x1e8] sm:$0xff] %v364
                %v366 = vld [vmem:[%s240 + $0x370] sm:$0xff]
                %367 = vst [vmem:[%s241 + $0x1f0] sm:$0xff] %v366
                %v368 = vld [vmem:[%s240 + $0x378] sm:$0xff]
                %369 = vst [vmem:[%s241 + $0x1f8] sm:$0xff] %v368
                %v370 = vld [vmem:[%s240 + $0x400] sm:$0xff]
                %371 = vst [vmem:[%s241 + $0x200] sm:$0xff] %v370
                %v372 = vld [vmem:[%s240 + $0x408] sm:$0xff]
                %373 = vst [vmem:[%s241 + $0x208] sm:$0xff] %v372
                %v374 = vld [vmem:[%s240 + $0x410] sm:$0xff]
                %375 = vst [vmem:[%s241 + $0x210] sm:$0xff] %v374
                %v376 = vld [vmem:[%s240 + $0x418] sm:$0xff]
                %377 = vst [vmem:[%s241 + $0x218] sm:$0xff] %v376
                %v378 = vld [vmem:[%s240 + $0x420] sm:$0xff]
                %379 = vst [vmem:[%s241 + $0x220] sm:$0xff] %v378
                %v380 = vld [vmem:[%s240 + $0x428] sm:$0xff]
                %381 = vst [vmem:[%s241 + $0x228] sm:$0xff] %v380
                %v382 = vld [vmem:[%s240 + $0x430] sm:$0xff]
                %383 = vst [vmem:[%s241 + $0x230] sm:$0xff] %v382
                %v384 = vld [vmem:[%s240 + $0x438] sm:$0xff]
                %385 = vst [vmem:[%s241 + $0x238] sm:$0xff] %v384
                %v386 = vld [vmem:[%s240 + $0x440] sm:$0xff]
                %387 = vst [vmem:[%s241 + $0x240] sm:$0xff] %v386
                %v388 = vld [vmem:[%s240 + $0x448] sm:$0xff]
                %389 = vst [vmem:[%s241 + $0x248] sm:$0xff] %v388
                %v390 = vld [vmem:[%s240 + $0x450] sm:$0xff]
                %391 = vst [vmem:[%s241 + $0x250] sm:$0xff] %v390
                %v392 = vld [vmem:[%s240 + $0x458] sm:$0xff]
                %393 = vst [vmem:[%s241 + $0x258] sm:$0xff] %v392
                %v394 = vld [vmem:[%s240 + $0x460] sm:$0xff]
                %395 = vst [vmem:[%s241 + $0x260] sm:$0xff] %v394
                %v396 = vld [vmem:[%s240 + $0x468] sm:$0xff]
                %397 = vst [vmem:[%s241 + $0x268] sm:$0xff] %v396
                %v398 = vld [vmem:[%s240 + $0x470] sm:$0xff]
                %399 = vst [vmem:[%s241 + $0x270] sm:$0xff] %v398
                %v400 = vld [vmem:[%s240 + $0x478] sm:$0xff]
                %401 = vst [vmem:[%s241 + $0x278] sm:$0xff] %v400
                %v402 = vld [vmem:[%s240 + $0x500] sm:$0xff]
                %403 = vst [vmem:[%s241 + $0x280] sm:$0xff] %v402
                %v404 = vld [vmem:[%s240 + $0x508] sm:$0xff]
                %405 = vst [vmem:[%s241 + $0x288] sm:$0xff] %v404
                %v406 = vld [vmem:[%s240 + $0x510] sm:$0xff]
                %407 = vst [vmem:[%s241 + $0x290] sm:$0xff] %v406
                %v408 = vld [vmem:[%s240 + $0x518] sm:$0xff]
                %409 = vst [vmem:[%s241 + $0x298] sm:$0xff] %v408
                %v410 = vld [vmem:[%s240 + $0x520] sm:$0xff]
                %411 = vst [vmem:[%s241 + $0x2a0] sm:$0xff] %v410
                %v412 = vld [vmem:[%s240 + $0x528] sm:$0xff]
                %413 = vst [vmem:[%s241 + $0x2a8] sm:$0xff] %v412
                %v414 = vld [vmem:[%s240 + $0x530] sm:$0xff]
                %415 = vst [vmem:[%s241 + $0x2b0] sm:$0xff] %v414
                %v416 = vld [vmem:[%s240 + $0x538] sm:$0xff]
                %417 = vst [vmem:[%s241 + $0x2b8] sm:$0xff] %v416
                %v418 = vld [vmem:[%s240 + $0x540] sm:$0xff]
                %419 = vst [vmem:[%s241 + $0x2c0] sm:$0xff] %v418
                %v420 = vld [vmem:[%s240 + $0x548] sm:$0xff]
                %421 = vst [vmem:[%s241 + $0x2c8] sm:$0xff] %v420
                %v422 = vld [vmem:[%s240 + $0x550] sm:$0xff]
                %423 = vst [vmem:[%s241 + $0x2d0] sm:$0xff] %v422
                %v424 = vld [vmem:[%s240 + $0x558] sm:$0xff]
                %425 = vst [vmem:[%s241 + $0x2d8] sm:$0xff] %v424
                %v426 = vld [vmem:[%s240 + $0x560] sm:$0xff]
                %427 = vst [vmem:[%s241 + $0x2e0] sm:$0xff] %v426
                %v428 = vld [vmem:[%s240 + $0x568] sm:$0xff]
                %429 = vst [vmem:[%s241 + $0x2e8] sm:$0xff] %v428
                %v430 = vld [vmem:[%s240 + $0x570] sm:$0xff]
                %431 = vst [vmem:[%s241 + $0x2f0] sm:$0xff] %v430
                %v432 = vld [vmem:[%s240 + $0x578] sm:$0xff]
                %433 = vst [vmem:[%s241 + $0x2f8] sm:$0xff] %v432
                %v434 = vld [vmem:[%s240 + $0x600] sm:$0xff]
                %435 = vst [vmem:[%s241 + $0x300] sm:$0xff] %v434
                %v436 = vld [vmem:[%s240 + $0x608] sm:$0xff]
                %437 = vst [vmem:[%s241 + $0x308] sm:$0xff] %v436
                %v438 = vld [vmem:[%s240 + $0x610] sm:$0xff]
                %439 = vst [vmem:[%s241 + $0x310] sm:$0xff] %v438
                %v440 = vld [vmem:[%s240 + $0x618] sm:$0xff]
                %441 = vst [vmem:[%s241 + $0x318] sm:$0xff] %v440
                %v442 = vld [vmem:[%s240 + $0x620] sm:$0xff]
                %443 = vst [vmem:[%s241 + $0x320] sm:$0xff] %v442
                %v444 = vld [vmem:[%s240 + $0x628] sm:$0xff]
                %445 = vst [vmem:[%s241 + $0x328] sm:$0xff] %v444
                %v446 = vld [vmem:[%s240 + $0x630] sm:$0xff]
                %447 = vst [vmem:[%s241 + $0x330] sm:$0xff] %v446
                %v448 = vld [vmem:[%s240 + $0x638] sm:$0xff]
                %449 = vst [vmem:[%s241 + $0x338] sm:$0xff] %v448
                %v450 = vld [vmem:[%s240 + $0x640] sm:$0xff]
                %451 = vst [vmem:[%s241 + $0x340] sm:$0xff] %v450
                %v452 = vld [vmem:[%s240 + $0x648] sm:$0xff]
                %453 = vst [vmem:[%s241 + $0x348] sm:$0xff] %v452
                %v454 = vld [vmem:[%s240 + $0x650] sm:$0xff]
                %455 = vst [vmem:[%s241 + $0x350] sm:$0xff] %v454
                %v456 = vld [vmem:[%s240 + $0x658] sm:$0xff]
                %457 = vst [vmem:[%s241 + $0x358] sm:$0xff] %v456
                %v458 = vld [vmem:[%s240 + $0x660] sm:$0xff]
                %459 = vst [vmem:[%s241 + $0x360] sm:$0xff] %v458
                %v460 = vld [vmem:[%s240 + $0x668] sm:$0xff]
                %461 = vst [vmem:[%s241 + $0x368] sm:$0xff] %v460
                %v462 = vld [vmem:[%s240 + $0x670] sm:$0xff]
                %463 = vst [vmem:[%s241 + $0x370] sm:$0xff] %v462
                %v464 = vld [vmem:[%s240 + $0x678] sm:$0xff]
                %465 = vst [vmem:[%s241 + $0x378] sm:$0xff] %v464
                %v466 = vld [vmem:[%s240 + $0x700] sm:$0xff]
                %467 = vst [vmem:[%s241 + $0x380] sm:$0xff] %v466
                %v468 = vld [vmem:[%s240 + $0x708] sm:$0xff]
                %469 = vst [vmem:[%s241 + $0x388] sm:$0xff] %v468
                %v470 = vld [vmem:[%s240 + $0x710] sm:$0xff]
                %471 = vst [vmem:[%s241 + $0x390] sm:$0xff] %v470
                %v472 = vld [vmem:[%s240 + $0x718] sm:$0xff]
                %473 = vst [vmem:[%s241 + $0x398] sm:$0xff] %v472
                %v474 = vld [vmem:[%s240 + $0x720] sm:$0xff]
                %475 = vst [vmem:[%s241 + $0x3a0] sm:$0xff] %v474
                %v476 = vld [vmem:[%s240 + $0x728] sm:$0xff]
                %477 = vst [vmem:[%s241 + $0x3a8] sm:$0xff] %v476
                %v478 = vld [vmem:[%s240 + $0x730] sm:$0xff]
                %479 = vst [vmem:[%s241 + $0x3b0] sm:$0xff] %v478
                %v480 = vld [vmem:[%s240 + $0x738] sm:$0xff]
                %481 = vst [vmem:[%s241 + $0x3b8] sm:$0xff] %v480
                %v482 = vld [vmem:[%s240 + $0x740] sm:$0xff]
                %483 = vst [vmem:[%s241 + $0x3c0] sm:$0xff] %v482
                %v484 = vld [vmem:[%s240 + $0x748] sm:$0xff]
                %485 = vst [vmem:[%s241 + $0x3c8] sm:$0xff] %v484
                %v486 = vld [vmem:[%s240 + $0x750] sm:$0xff]
                %487 = vst [vmem:[%s241 + $0x3d0] sm:$0xff] %v486
                %v488 = vld [vmem:[%s240 + $0x758] sm:$0xff]
                %489 = vst [vmem:[%s241 + $0x3d8] sm:$0xff] %v488
                %v490 = vld [vmem:[%s240 + $0x760] sm:$0xff]
                %491 = vst [vmem:[%s241 + $0x3e0] sm:$0xff] %v490
                %v492 = vld [vmem:[%s240 + $0x768] sm:$0xff]
                %493 = vst [vmem:[%s241 + $0x3e8] sm:$0xff] %v492
                %v494 = vld [vmem:[%s240 + $0x770] sm:$0xff]
                %495 = vst [vmem:[%s241 + $0x3f0] sm:$0xff] %v494
                %v496 = vld [vmem:[%s240 + $0x778] sm:$0xff]
                %497 = vst [vmem:[%s241 + $0x3f8] sm:$0xff] %v496
              $region57: #{tpu_custom_call.1} parent=51 // loop_footer
                %s239 = sadd.s32 1, %s235
              $region58: #{tpu_custom_call.1} parent=51 // loop_footer_branch
                %234 = sbr.rel target = $region54
              $region59: #{tpu_custom_call.1} parent=51 // loop_exit
                _
            $region52: #{tpu_custom_call.1} parent=43 // pred_fallthru
              _
          $region44: #{tpu_custom_call.1} parent=39 // pred_fallthru
            _
          %766 = vnop
        $region40: #{tpu_custom_call.1} parent=31 // pred_fallthru
          _
      $region32: #{tpu_custom_call.1} parent=5 // pred_fallthru
        _
      %p767 = scmp.le.s32.totalorder 1, %s15
      %p768 = scmp.lt.s32.totalorder %s15, 3
      %p769 = pnand %p767, %p768
      %p770 = pneg %p769
      // Predicated region
      $region75: #{tpu_custom_call.1} parent=5 // pred_check
        _
      $region76: #{tpu_custom_call.1} parent=5 // pred_check_branch
        %772 = sbr.rel (%p769) target = $region78
      $region77: #{tpu_custom_call.1} parent=5 // pred_region
        %s773 = ssub.s32 %s15, 1
        %s774 = sand.u32 %s54, 1
        %s775 = sand.u32 %s54, 1
        %s776 = smul.addr %s775, 1024
        %s777 = scalar_lea.vmem [#allocation2], %s776
        // Predicated region
        $region79: #{tpu_custom_call.1} parent=77 // pred_check
          %p778 = pneg %p67
        $region80: #{tpu_custom_call.1} parent=77 // pred_check_branch
          %780 = sbr.rel (%p778) target = $region82
        $region81: #{tpu_custom_call.1} parent=77 // pred_region
          _
        $region82: #{tpu_custom_call.1} parent=77 // pred_fallthru
          _
        %s781 = smul.u32 16, %s20
        %p782 = scmp.lt.s32.totalorder %s781, 31
        %s783 = scalar_select %p782, %s781, 31
        %s784 = smul.addr %s783, 8
        %s785 = scalar_lea.vmem %s0, %s784
        %p786 = pneg %p41
        %p787 = pneg %p38
        %s788 = sand.u32 %s54, 1
        %s789 = sand.u32 %s54, 1
        %s790 = smul.addr %s789, 1024
        %s791 = scalar_lea.vmem [#allocation2], %s790
        %p792 = pneg %p67
        %p793 = pneg %p64
        %p794 = pneg %p88
        %p795 = pneg %p85
        %p796 = pneg %p109
        %p797 = pneg %p106
        %p798 = pneg %p130
        %p799 = pneg %p127
        %p800 = pneg %p151
        %p801 = pneg %p148
        %p802 = pneg %p177
        %p803 = pneg %p174
        %s804 = sand.u32 %s164, 1
        %s805 = scalar_lea.sflag [#allocation4], %s804
        %s806 = sand.u32 %s164, 1
        %s807 = smul.addr %s806, 128
        %s808 = scalar_lea.vmem [#allocation3], %s807
        %s809 = smul.u32 16, %s20
        %p810 = scmp.lt.s32.totalorder %s809, 31
        %s811 = scalar_select %p810, %s809, 31
        %s812 = smul.addr %s811, 8
        %s813 = scalar_lea.vmem %s0, %s812
        %s814 = smul.u32 16, %s20
        %s815 = smul.u32 16, %s20
        %s816 = smul.u32 16, %s20
        %v817 = vld [vmem:[%s813] sm:$0xff]
        %v818 = vld [vmem:[%s813 + $0x8] sm:$0xff]
        %v819 = vld [vmem:[%s813 + $0x10] sm:$0xff]
        %v820 = vld [vmem:[%s813 + $0x18] sm:$0xff]
        %v821 = vld [vmem:[%s813 + $0x20] sm:$0xff]
        %v822 = vld [vmem:[%s813 + $0x28] sm:$0xff]
        %v823 = vld [vmem:[%s813 + $0x30] sm:$0xff]
        %v824 = vld [vmem:[%s813 + $0x38] sm:$0xff]
        %v825 = vld [vmem:[%s813 + $0x40] sm:$0xff]
        %v826 = vld [vmem:[%s813 + $0x48] sm:$0xff]
        %v827 = vld [vmem:[%s813 + $0x50] sm:$0xff]
        %v828 = vld [vmem:[%s813 + $0x58] sm:$0xff]
        %v829 = vld [vmem:[%s813 + $0x60] sm:$0xff]
        %v830 = vld [vmem:[%s813 + $0x68] sm:$0xff]
        %v831 = vld [vmem:[%s813 + $0x70] sm:$0xff]
        %v832 = vld [vmem:[%s813 + $0x78] sm:$0xff]
        %v833 = vld [vmem:[%s777] sm:$0xff]
        %v834 = vld [vmem:[%s777 + $0x8] sm:$0xff]
        %v835 = vld [vmem:[%s777 + $0x10] sm:$0xff]
        %v836 = vld [vmem:[%s777 + $0x18] sm:$0xff]
        %v837 = vld [vmem:[%s777 + $0x20] sm:$0xff]
        %v838 = vld [vmem:[%s777 + $0x28] sm:$0xff]
        %v839 = vld [vmem:[%s777 + $0x30] sm:$0xff]
        %v840 = vld [vmem:[%s777 + $0x38] sm:$0xff]
        %v841 = vld [vmem:[%s777 + $0x40] sm:$0xff]
        %v842 = vld [vmem:[%s777 + $0x48] sm:$0xff]
        %v843 = vld [vmem:[%s777 + $0x50] sm:$0xff]
        %v844 = vld [vmem:[%s777 + $0x58] sm:$0xff]
        %v845 = vld [vmem:[%s777 + $0x60] sm:$0xff]
        %v846 = vld [vmem:[%s777 + $0x68] sm:$0xff]
        %v847 = vld [vmem:[%s777 + $0x70] sm:$0xff]
        %v848 = vld [vmem:[%s777 + $0x78] sm:$0xff]
        %v849 = vld [vmem:[%s777 + $0x80] sm:$0xff]
        %v850 = vld [vmem:[%s777 + $0x88] sm:$0xff]
        %v851 = vld [vmem:[%s777 + $0x90] sm:$0xff]
        %v852 = vld [vmem:[%s777 + $0x98] sm:$0xff]
        %v853 = vld [vmem:[%s777 + $0xa0] sm:$0xff]
        %v854 = vld [vmem:[%s777 + $0xa8] sm:$0xff]
        %v855 = vld [vmem:[%s777 + $0xb0] sm:$0xff]
        %v856 = vld [vmem:[%s777 + $0xb8] sm:$0xff]
        %v857 = vld [vmem:[%s777 + $0xc0] sm:$0xff]
        %v858 = vld [vmem:[%s777 + $0xc8] sm:$0xff]
        %v859 = vld [vmem:[%s777 + $0xd0] sm:$0xff]
        %v860 = vld [vmem:[%s777 + $0xd8] sm:$0xff]
        %v861 = vld [vmem:[%s777 + $0xe0] sm:$0xff]
        %v862 = vld [vmem:[%s777 + $0xe8] sm:$0xff]
        %v863 = vld [vmem:[%s777 + $0xf0] sm:$0xff]
        %v864 = vld [vmem:[%s777 + $0xf8] sm:$0xff]
        %v865 = vld [vmem:[%s777 + $0x100] sm:$0xff]
        %v866 = vld [vmem:[%s777 + $0x108] sm:$0xff]
        %v867 = vld [vmem:[%s777 + $0x110] sm:$0xff]
        %v868 = vld [vmem:[%s777 + $0x118] sm:$0xff]
        %v869 = vld [vmem:[%s777 + $0x120] sm:$0xff]
        %v870 = vld [vmem:[%s777 + $0x128] sm:$0xff]
        %v871 = vld [vmem:[%s777 + $0x130] sm:$0xff]
        %v872 = vld [vmem:[%s777 + $0x138] sm:$0xff]
        %v873 = vld [vmem:[%s777 + $0x140] sm:$0xff]
        %v874 = vld [vmem:[%s777 + $0x148] sm:$0xff]
        %v875 = vld [vmem:[%s777 + $0x150] sm:$0xff]
        %v876 = vld [vmem:[%s777 + $0x158] sm:$0xff]
        %v877 = vld [vmem:[%s777 + $0x160] sm:$0xff]
        %v878 = vld [vmem:[%s777 + $0x168] sm:$0xff]
        %v879 = vld [vmem:[%s777 + $0x170] sm:$0xff]
        %v880 = vld [vmem:[%s777 + $0x178] sm:$0xff]
        %v881 = vld [vmem:[%s777 + $0x180] sm:$0xff]
        %v882 = vld [vmem:[%s777 + $0x188] sm:$0xff]
        %v883 = vld [vmem:[%s777 + $0x190] sm:$0xff]
        %v884 = vld [vmem:[%s777 + $0x198] sm:$0xff]
        %v885 = vld [vmem:[%s777 + $0x1a0] sm:$0xff]
        %v886 = vld [vmem:[%s777 + $0x1a8] sm:$0xff]
        %v887 = vld [vmem:[%s777 + $0x1b0] sm:$0xff]
        %v888 = vld [vmem:[%s777 + $0x1b8] sm:$0xff]
        %v889 = vld [vmem:[%s777 + $0x1c0] sm:$0xff]
        %v890 = vld [vmem:[%s777 + $0x1c8] sm:$0xff]
        %v891 = vld [vmem:[%s777 + $0x1d0] sm:$0xff]
        %v892 = vld [vmem:[%s777 + $0x1d8] sm:$0xff]
        %v893 = vld [vmem:[%s777 + $0x1e0] sm:$0xff]
        %v894 = vld [vmem:[%s777 + $0x1e8] sm:$0xff]
        %v895 = vld [vmem:[%s777 + $0x1f0] sm:$0xff]
        %v896 = vld [vmem:[%s777 + $0x1f8] sm:$0xff]
        %v897 = vld [vmem:[%s777 + $0x200] sm:$0xff]
        %v898 = vld [vmem:[%s777 + $0x208] sm:$0xff]
        %v899 = vld [vmem:[%s777 + $0x210] sm:$0xff]
        %v900 = vld [vmem:[%s777 + $0x218] sm:$0xff]
        %v901 = vld [vmem:[%s777 + $0x220] sm:$0xff]
        %v902 = vld [vmem:[%s777 + $0x228] sm:$0xff]
        %v903 = vld [vmem:[%s777 + $0x230] sm:$0xff]
        %v904 = vld [vmem:[%s777 + $0x238] sm:$0xff]
        %v905 = vld [vmem:[%s777 + $0x240] sm:$0xff]
        %v906 = vld [vmem:[%s777 + $0x248] sm:$0xff]
        %v907 = vld [vmem:[%s777 + $0x250] sm:$0xff]
        %v908 = vld [vmem:[%s777 + $0x258] sm:$0xff]
        %v909 = vld [vmem:[%s777 + $0x260] sm:$0xff]
        %v910 = vld [vmem:[%s777 + $0x268] sm:$0xff]
        %v911 = vld [vmem:[%s777 + $0x270] sm:$0xff]
        %v912 = vld [vmem:[%s777 + $0x278] sm:$0xff]
        %v913 = vld [vmem:[%s777 + $0x280] sm:$0xff]
        %v914 = vld [vmem:[%s777 + $0x288] sm:$0xff]
        %v915 = vld [vmem:[%s777 + $0x290] sm:$0xff]
        %v916 = vld [vmem:[%s777 + $0x298] sm:$0xff]
        %v917 = vld [vmem:[%s777 + $0x2a0] sm:$0xff]
        %v918 = vld [vmem:[%s777 + $0x2a8] sm:$0xff]
        %v919 = vld [vmem:[%s777 + $0x2b0] sm:$0xff]
        %v920 = vld [vmem:[%s777 + $0x2b8] sm:$0xff]
        %v921 = vld [vmem:[%s777 + $0x2c0] sm:$0xff]
        %v922 = vld [vmem:[%s777 + $0x2c8] sm:$0xff]
        %v923 = vld [vmem:[%s777 + $0x2d0] sm:$0xff]
        %v924 = vld [vmem:[%s777 + $0x2d8] sm:$0xff]
        %v925 = vld [vmem:[%s777 + $0x2e0] sm:$0xff]
        %v926 = vld [vmem:[%s777 + $0x2e8] sm:$0xff]
        %v927 = vld [vmem:[%s777 + $0x2f0] sm:$0xff]
        %v928 = vld [vmem:[%s777 + $0x2f8] sm:$0xff]
        %v929 = vld [vmem:[%s777 + $0x300] sm:$0xff]
        %v930 = vld [vmem:[%s777 + $0x308] sm:$0xff]
        %v931 = vld [vmem:[%s777 + $0x310] sm:$0xff]
        %v932 = vld [vmem:[%s777 + $0x318] sm:$0xff]
        %v933 = vld [vmem:[%s777 + $0x320] sm:$0xff]
        %v934 = vld [vmem:[%s777 + $0x328] sm:$0xff]
        %v935 = vld [vmem:[%s777 + $0x330] sm:$0xff]
        %v936 = vld [vmem:[%s777 + $0x338] sm:$0xff]
        %v937 = vld [vmem:[%s777 + $0x340] sm:$0xff]
        %v938 = vld [vmem:[%s777 + $0x348] sm:$0xff]
        %v939 = vld [vmem:[%s777 + $0x350] sm:$0xff]
        %v940 = vld [vmem:[%s777 + $0x358] sm:$0xff]
        %v941 = vld [vmem:[%s777 + $0x360] sm:$0xff]
        %v942 = vld [vmem:[%s777 + $0x368] sm:$0xff]
        %v943 = vld [vmem:[%s777 + $0x370] sm:$0xff]
        %v944 = vld [vmem:[%s777 + $0x378] sm:$0xff]
        %v945 = vld [vmem:[%s777 + $0x380] sm:$0xff]
        %v946 = vld [vmem:[%s777 + $0x388] sm:$0xff]
        %v947 = vld [vmem:[%s777 + $0x390] sm:$0xff]
        %v948 = vld [vmem:[%s777 + $0x398] sm:$0xff]
        %v949 = vld [vmem:[%s777 + $0x3a0] sm:$0xff]
        %v950 = vld [vmem:[%s777 + $0x3a8] sm:$0xff]
        %v951 = vld [vmem:[%s777 + $0x3b0] sm:$0xff]
        %v952 = vld [vmem:[%s777 + $0x3b8] sm:$0xff]
        %v953 = vld [vmem:[%s777 + $0x3c0] sm:$0xff]
        %v954 = vld [vmem:[%s777 + $0x3c8] sm:$0xff]
        %v955 = vld [vmem:[%s777 + $0x3d0] sm:$0xff]
        %v956 = vld [vmem:[%s777 + $0x3d8] sm:$0xff]
        %v957 = vld [vmem:[%s777 + $0x3e0] sm:$0xff]
        %v958 = vld [vmem:[%s777 + $0x3e8] sm:$0xff]
        %v959 = vld [vmem:[%s777 + $0x3f0] sm:$0xff]
        %v960 = vld [vmem:[%s777 + $0x3f8] sm:$0xff]
        %v961 = vld [vmem:[%s2] sm:$0xff]
        %v962 = vld [vmem:[%s2 + $0x8] sm:$0xff]
        %v963 = vld [vmem:[%s2 + $0x10] sm:$0xff]
        %v964 = vld [vmem:[%s2 + $0x18] sm:$0xff]
        %v965 = vld [vmem:[%s2 + $0x20] sm:$0xff]
        %v966 = vld [vmem:[%s2 + $0x28] sm:$0xff]
        %v967 = vld [vmem:[%s2 + $0x30] sm:$0xff]
        %v968 = vld [vmem:[%s2 + $0x38] sm:$0xff]
        %vm969 = vcmask 261120
        %v971 = vsel %vm969, %v817, 0
        %v974 = vsel %vm969, %v818, 0
        %v977 = vsel %vm969, %v819, 0
        %v980 = vsel %vm969, %v820, 0
        %v983 = vsel %vm969, %v821, 0
        %v986 = vsel %vm969, %v822, 0
        %v989 = vsel %vm969, %v823, 0
        %v992 = vsel %vm969, %v824, 0
        %v995 = vsel %vm969, %v825, 0
        %v998 = vsel %vm969, %v826, 0
        %v1001 = vsel %vm969, %v827, 0
        %v1004 = vsel %vm969, %v828, 0
        %v1007 = vsel %vm969, %v829, 0
        %v1010 = vsel %vm969, %v830, 0
        %v1013 = vsel %vm969, %v831, 0
        %v1016 = vsel %vm969, %v832, 0
        %1018 = vmatprep.subr.mxu0 %v962
        %1019 = vmatpush1.msra.mxu0 %v961
        %1020 = vmatprep.subr.mxu0 %v964
        %1021 = vmatpush1.msra.mxu0 %v963
        %1022 = vmatprep.subr.mxu0 %v966
        %1023 = vmatpush1.msra.mxu0 %v965
        %1024 = vmatprep.subr.mxu0 %v968
        %1025 = vmatpush1.msra.mxu0 %v967
        %1026 = vmatprep.subr.mxu0 0.0
        %1027 = vmatpush1.msra.mxu0 0.0
        %1028 = vmatprep.subr.mxu0 0.0
        %1029 = vmatpush1.msra.mxu0 0.0
        %1030 = vmatprep.subr.mxu0 0.0
        %1031 = vmatpush1.msra.mxu0 0.0
        %1032 = vmatprep.subr.mxu0 0.0
        %1033 = vmatpush1.msra.mxu0 0.0
        %1034 = vmatprep.subr.mxu0 0.0
        %1035 = vmatpush1.msra.mxu0 0.0
        %1036 = vmatprep.subr.mxu0 0.0
        %1037 = vmatpush1.msra.mxu0 0.0
        %1038 = vmatprep.subr.mxu0 0.0
        %1039 = vmatpush1.msra.mxu0 0.0
        %1040 = vmatprep.subr.mxu0 0.0
        %1041 = vmatpush1.msra.mxu0 0.0
        %1042 = vmatprep.subr.mxu0 0.0
        %1043 = vmatpush1.msra.mxu0 0.0
        %1044 = vmatprep.subr.mxu0 0.0
        %1045 = vmatpush1.msra.mxu0 0.0
        %1046 = vmatprep.subr.mxu0 0.0
        %1047 = vmatpush1.msra.mxu0 0.0
        %1048 = vmatprep.subr.mxu0 0.0
        %1049 = vmatpush1.msra.mxu0 0.0
        %1050 = vmatprep.subr.mxu0 0.0
        %1051 = vmatpush1.msra.mxu0 0.0
        %1052 = vmatprep.subr.mxu0 0.0
        %1053 = vmatpush1.msra.mxu0 0.0
        %1054 = vmatprep.subr.mxu0 0.0
        %1055 = vmatpush1.msra.mxu0 0.0
        %1056 = vmatprep.subr.mxu0 0.0
        %1057 = vmatpush1.msra.mxu0 0.0
        %1058 = vmatprep.subr.mxu0 0.0
        %1059 = vmatpush1.msra.mxu0 0.0
        %1060 = vmatprep.subr.mxu0 0.0
        %1061 = vmatpush1.msra.mxu0 0.0
        %1062 = vmatprep.subr.mxu0 0.0
        %1063 = vmatpush1.msra.mxu0 0.0
        %1064 = vmatprep.subr.mxu0 0.0
        %1065 = vmatpush1.msra.mxu0 0.0
        %1066 = vmatprep.subr.mxu0 0.0
        %1067 = vmatpush1.msra.mxu0 0.0
        %1068 = vmatprep.subr.mxu0 0.0
        %1069 = vmatpush1.msra.mxu0 0.0
        %1070 = vmatprep.subr.mxu0 0.0
        %1071 = vmatpush1.msra.mxu0 0.0
        %1072 = vmatprep.subr.mxu0 0.0
        %1073 = vmatpush1.msra.mxu0 0.0
        %1074 = vmatprep.subr.mxu0 0.0
        %1075 = vmatpush1.msra.mxu0 0.0
        %1076 = vmatprep.subr.mxu0 0.0
        %1077 = vmatpush1.msra.mxu0 0.0
        %1078 = vmatprep.subr.mxu0 0.0
        %1079 = vmatpush1.msra.mxu0 0.0
        %1080 = vmatprep.subr.mxu0 0.0
        %1081 = vmatpush1.msra.mxu0 0.0
        %1082 = vmatprep.mubr.f32.mxu0 0.0
        %1083 = vmatmul.mubr.f32.gmra.mrb[0].mxu0 %v971
        %v1084 = vpop.f32.mrb[0].mxu0
        %v1085 = vadd.f32 0.0, %v1084
        %v1086 = vpop.f32.mrb[0].mxu0
        %v1087 = vadd.f32 0.0, %v1086
        %1088 = vmatprep.mubr.f32.mxu0 0.0
        %1089 = vmatmul.mubr.f32.gmra.mrb[0].mxu0 %v974
        %v1090 = vpop.f32.mrb[0].mxu0
        %v1091 = vadd.f32 0.0, %v1090
        %v1092 = vpop.f32.mrb[0].mxu0
        %v1093 = vadd.f32 0.0, %v1092
        %1094 = vmatprep.mubr.f32.mxu0 0.0
        %1095 = vmatmul.mubr.f32.gmra.mrb[0].mxu0 %v977
        %v1096 = vpop.f32.mrb[0].mxu0
        %v1097 = vadd.f32 0.0, %v1096
        %v1098 = vpop.f32.mrb[0].mxu0
        %v1099 = vadd.f32 0.0, %v1098
        %1100 = vmatprep.mubr.f32.mxu0 0.0
        %1101 = vmatmul.mubr.f32.gmra.mrb[0].mxu0 %v980
        %v1102 = vpop.f32.mrb[0].mxu0
        %v1103 = vadd.f32 0.0, %v1102
        %v1104 = vpop.f32.mrb[0].mxu0
        %v1105 = vadd.f32 0.0, %v1104
        %1106 = vmatprep.mubr.f32.mxu0 0.0
        %1107 = vmatmul.mubr.f32.gmra.mrb[0].mxu0 %v983
        %v1108 = vpop.f32.mrb[0].mxu0
        %v1109 = vadd.f32 0.0, %v1108
        %v1110 = vpop.f32.mrb[0].mxu0
        %v1111 = vadd.f32 0.0, %v1110
        %1112 = vmatprep.mubr.f32.mxu0 0.0
        %1113 = vmatmul.mubr.f32.gmra.mrb[0].mxu0 %v986
        %v1114 = vpop.f32.mrb[0].mxu0
        %v1115 = vadd.f32 0.0, %v1114
        %v1116 = vpop.f32.mrb[0].mxu0
        %v1117 = vadd.f32 0.0, %v1116
        %1118 = vmatprep.mubr.f32.mxu0 0.0
        %1119 = vmatmul.mubr.f32.gmra.mrb[0].mxu0 %v989
        %v1120 = vpop.f32.mrb[0].mxu0
        %v1121 = vadd.f32 0.0, %v1120
        %v1122 = vpop.f32.mrb[0].mxu0
        %v1123 = vadd.f32 0.0, %v1122
        %1124 = vmatprep.mubr.f32.mxu0 0.0
        %1125 = vmatmul.mubr.f32.gmra.mrb[0].mxu0 %v992
        %v1126 = vpop.f32.mrb[0].mxu0
        %v1127 = vadd.f32 0.0, %v1126
        %v1128 = vpop.f32.mrb[0].mxu0
        %v1129 = vadd.f32 0.0, %v1128
        %1130 = vmatprep.mubr.f32.mxu0 0.0
        %1131 = vmatmul.mubr.f32.gmra.mrb[0].mxu0 %v995
        %v1132 = vpop.f32.mrb[0].mxu0
        %v1133 = vadd.f32 0.0, %v1132
        %v1134 = vpop.f32.mrb[0].mxu0
        %v1135 = vadd.f32 0.0, %v1134
        %1136 = vmatprep.mubr.f32.mxu0 0.0
        %1137 = vmatmul.mubr.f32.gmra.mrb[0].mxu0 %v998
        %v1138 = vpop.f32.mrb[0].mxu0
        %v1139 = vadd.f32 0.0, %v1138
        %v1140 = vpop.f32.mrb[0].mxu0
        %v1141 = vadd.f32 0.0, %v1140
        %1142 = vmatprep.mubr.f32.mxu0 0.0
        %1143 = vmatmul.mubr.f32.gmra.mrb[0].mxu0 %v1001
        %v1144 = vpop.f32.mrb[0].mxu0
        %v1145 = vadd.f32 0.0, %v1144
        %v1146 = vpop.f32.mrb[0].mxu0
        %v1147 = vadd.f32 0.0, %v1146
        %1148 = vmatprep.mubr.f32.mxu0 0.0
        %1149 = vmatmul.mubr.f32.gmra.mrb[0].mxu0 %v1004
        %v1150 = vpop.f32.mrb[0].mxu0
        %v1151 = vadd.f32 0.0, %v1150
        %v1152 = vpop.f32.mrb[0].mxu0
        %v1153 = vadd.f32 0.0, %v1152
        %1154 = vmatprep.mubr.f32.mxu0 0.0
        %1155 = vmatmul.mubr.f32.gmra.mrb[0].mxu0 %v1007
        %v1156 = vpop.f32.mrb[0].mxu0
        %v1157 = vadd.f32 0.0, %v1156
        %v1158 = vpop.f32.mrb[0].mxu0
        %v1159 = vadd.f32 0.0, %v1158
        %1160 = vmatprep.mubr.f32.mxu0 0.0
        %1161 = vmatmul.mubr.f32.gmra.mrb[0].mxu0 %v1010
        %v1162 = vpop.f32.mrb[0].mxu0
        %v1163 = vadd.f32 0.0, %v1162
        %v1164 = vpop.f32.mrb[0].mxu0
        %v1165 = vadd.f32 0.0, %v1164
        %1166 = vmatprep.mubr.f32.mxu0 0.0
        %1167 = vmatmul.mubr.f32.gmra.mrb[0].mxu0 %v1013
        %v1168 = vpop.f32.mrb[0].mxu0
        %v1169 = vadd.f32 0.0, %v1168
        %v1170 = vpop.f32.mrb[0].mxu0
        %v1171 = vadd.f32 0.0, %v1170
        %1172 = vmatprep.mubr.f32.mxu0 0.0
        %1173 = vmatmul.mubr.f32.gmra.mrb[0].mxu0 %v1016
        %v1174 = vpop.f32.mrb[0].mxu0
        %v1175 = vadd.f32 0.0, %v1174
        %v1176 = vpop.f32.mrb[0].mxu0
        %v1177 = vadd.f32 0.0, %v1176
        %1178 = vdwg.mxu0
        %v1179 = vld [vmem:[%s4] sm:$0x1]
        %v1181 = vlaneseq
        %v1182 = vshrl.u32 %v1181, 7
        %v1183 = vsub.s32 0, %v1182
        %v1184 = vrot.slane %v1179, %v1183
        %v1186 = vadd.f32 %v1085, %v1184
        %v1187 = vadd.f32 %v1091, %v1184
        %v1188 = vadd.f32 %v1097, %v1184
        %v1189 = vadd.f32 %v1103, %v1184
        %v1190 = vadd.f32 %v1109, %v1184
        %v1191 = vadd.f32 %v1115, %v1184
        %v1192 = vadd.f32 %v1121, %v1184
        %v1193 = vadd.f32 %v1127, %v1184
        %v1194 = vadd.f32 %v1133, %v1184
        %v1195 = vadd.f32 %v1139, %v1184
        %v1196 = vadd.f32 %v1145, %v1184
        %v1197 = vadd.f32 %v1151, %v1184
        %v1198 = vadd.f32 %v1157, %v1184
        %v1199 = vadd.f32 %v1163, %v1184
        %v1200 = vadd.f32 %v1169, %v1184
        %v1201 = vadd.f32 %v1175, %v1184
        %v1202 = vld [vmem:[%s5] sm:$0x1]
        %v1204 = vlaneseq
        %v1205 = vshrl.u32 %v1204, 7
        %v1206 = vsub.s32 0, %v1205
        %v1207 = vrot.slane %v1202, %v1206
        %v1209 = vadd.f32 %v1087, %v1207
        %v1210 = vadd.f32 %v1093, %v1207
        %v1211 = vadd.f32 %v1099, %v1207
        %v1212 = vadd.f32 %v1105, %v1207
        %v1213 = vadd.f32 %v1111, %v1207
        %v1214 = vadd.f32 %v1117, %v1207
        %v1215 = vadd.f32 %v1123, %v1207
        %v1216 = vadd.f32 %v1129, %v1207
        %v1217 = vadd.f32 %v1135, %v1207
        %v1218 = vadd.f32 %v1141, %v1207
        %v1219 = vadd.f32 %v1147, %v1207
        %v1220 = vadd.f32 %v1153, %v1207
        %v1221 = vadd.f32 %v1159, %v1207
        %v1222 = vadd.f32 %v1165, %v1207
        %v1223 = vadd.f32 %v1171, %v1207
        %v1224 = vadd.f32 %v1177, %v1207
        %v1225 = vsub.f32 %v833, %v817
        %v1226 = vsub.f32 %v834, %v818
        %v1227 = vsub.f32 %v835, %v819
        %v1228 = vsub.f32 %v836, %v820
        %v1229 = vsub.f32 %v837, %v821
        %v1230 = vsub.f32 %v838, %v822
        %v1231 = vsub.f32 %v839, %v823
        %v1232 = vsub.f32 %v840, %v824
        %v1233 = vsub.f32 %v841, %v825
        %v1234 = vsub.f32 %v842, %v826
        %v1235 = vsub.f32 %v843, %v827
        %v1236 = vsub.f32 %v844, %v828
        %v1237 = vsub.f32 %v845, %v829
        %v1238 = vsub.f32 %v846, %v830
        %v1239 = vsub.f32 %v847, %v831
        %v1240 = vsub.f32 %v848, %v832
        %v1241 = vsub.f32 %v849, %v817
        %v1242 = vsub.f32 %v850, %v818
        %v1243 = vsub.f32 %v851, %v819
        %v1244 = vsub.f32 %v852, %v820
        %v1245 = vsub.f32 %v853, %v821
        %v1246 = vsub.f32 %v854, %v822
        %v1247 = vsub.f32 %v855, %v823
        %v1248 = vsub.f32 %v856, %v824
        %v1249 = vsub.f32 %v857, %v825
        %v1250 = vsub.f32 %v858, %v826
        %v1251 = vsub.f32 %v859, %v827
        %v1252 = vsub.f32 %v860, %v828
        %v1253 = vsub.f32 %v861, %v829
        %v1254 = vsub.f32 %v862, %v830
        %v1255 = vsub.f32 %v863, %v831
        %v1256 = vsub.f32 %v864, %v832
        %v1257 = vsub.f32 %v865, %v817
        %v1258 = vsub.f32 %v866, %v818
        %v1259 = vsub.f32 %v867, %v819
        %v1260 = vsub.f32 %v868, %v820
        %v1261 = vsub.f32 %v869, %v821
        %v1262 = vsub.f32 %v870, %v822
        %v1263 = vsub.f32 %v871, %v823
        %v1264 = vsub.f32 %v872, %v824
        %v1265 = vsub.f32 %v873, %v825
        %v1266 = vsub.f32 %v874, %v826
        %v1267 = vsub.f32 %v875, %v827
        %v1268 = vsub.f32 %v876, %v828
        %v1269 = vsub.f32 %v877, %v829
        %v1270 = vsub.f32 %v878, %v830
        %v1271 = vsub.f32 %v879, %v831
        %v1272 = vsub.f32 %v880, %v832
        %v1273 = vsub.f32 %v881, %v817
        %v1274 = vsub.f32 %v882, %v818
        %v1275 = vsub.f32 %v883, %v819
        %v1276 = vsub.f32 %v884, %v820
        %v1277 = vsub.f32 %v885, %v821
        %v1278 = vsub.f32 %v886, %v822
        %v1279 = vsub.f32 %v887, %v823
        %v1280 = vsub.f32 %v888, %v824
        %v1281 = vsub.f32 %v889, %v825
        %v1282 = vsub.f32 %v890, %v826
        %v1283 = vsub.f32 %v891, %v827
        %v1284 = vsub.f32 %v892, %v828
        %v1285 = vsub.f32 %v893, %v829
        %v1286 = vsub.f32 %v894, %v830
        %v1287 = vsub.f32 %v895, %v831
        %v1288 = vsub.f32 %v896, %v832
        %v1289 = vsub.f32 %v897, %v817
        %v1290 = vsub.f32 %v898, %v818
        %v1291 = vsub.f32 %v899, %v819
        %v1292 = vsub.f32 %v900, %v820
        %v1293 = vsub.f32 %v901, %v821
        %v1294 = vsub.f32 %v902, %v822
        %v1295 = vsub.f32 %v903, %v823
        %v1296 = vsub.f32 %v904, %v824
        %v1297 = vsub.f32 %v905, %v825
        %v1298 = vsub.f32 %v906, %v826
        %v1299 = vsub.f32 %v907, %v827
        %v1300 = vsub.f32 %v908, %v828
        %v1301 = vsub.f32 %v909, %v829
        %v1302 = vsub.f32 %v910, %v830
        %v1303 = vsub.f32 %v911, %v831
        %v1304 = vsub.f32 %v912, %v832
        %v1305 = vsub.f32 %v913, %v817
        %v1306 = vsub.f32 %v914, %v818
        %v1307 = vsub.f32 %v915, %v819
        %v1308 = vsub.f32 %v916, %v820
        %v1309 = vsub.f32 %v917, %v821
        %v1310 = vsub.f32 %v918, %v822
        %v1311 = vsub.f32 %v919, %v823
        %v1312 = vsub.f32 %v920, %v824
        %v1313 = vsub.f32 %v921, %v825
        %v1314 = vsub.f32 %v922, %v826
        %v1315 = vsub.f32 %v923, %v827
        %v1316 = vsub.f32 %v924, %v828
        %v1317 = vsub.f32 %v925, %v829
        %v1318 = vsub.f32 %v926, %v830
        %v1319 = vsub.f32 %v927, %v831
        %v1320 = vsub.f32 %v928, %v832
        %v1321 = vsub.f32 %v929, %v817
        %v1322 = vsub.f32 %v930, %v818
        %v1323 = vsub.f32 %v931, %v819
        %v1324 = vsub.f32 %v932, %v820
        %v1325 = vsub.f32 %v933, %v821
        %v1326 = vsub.f32 %v934, %v822
        %v1327 = vsub.f32 %v935, %v823
        %v1328 = vsub.f32 %v936, %v824
        %v1329 = vsub.f32 %v937, %v825
        %v1330 = vsub.f32 %v938, %v826
        %v1331 = vsub.f32 %v939, %v827
        %v1332 = vsub.f32 %v940, %v828
        %v1333 = vsub.f32 %v941, %v829
        %v1334 = vsub.f32 %v942, %v830
        %v1335 = vsub.f32 %v943, %v831
        %v1336 = vsub.f32 %v944, %v832
        %v1337 = vsub.f32 %v945, %v817
        %v1338 = vsub.f32 %v946, %v818
        %v1339 = vsub.f32 %v947, %v819
        %v1340 = vsub.f32 %v948, %v820
        %v1341 = vsub.f32 %v949, %v821
        %v1342 = vsub.f32 %v950, %v822
        %v1343 = vsub.f32 %v951, %v823
        %v1344 = vsub.f32 %v952, %v824
        %v1345 = vsub.f32 %v953, %v825
        %v1346 = vsub.f32 %v954, %v826
        %v1347 = vsub.f32 %v955, %v827
        %v1348 = vsub.f32 %v956, %v828
        %v1349 = vsub.f32 %v957, %v829
        %v1350 = vsub.f32 %v958, %v830
        %v1351 = vsub.f32 %v959, %v831
        %v1352 = vsub.f32 %v960, %v832
        %v1353 = vld [vmem:[%s3] sm:$0xff]
        %v1354 = vld [vmem:[%s3 + $0x8] sm:$0xff]
        %v1355 = vld [vmem:[%s3 + $0x10] sm:$0xff]
        %v1356 = vld [vmem:[%s3 + $0x18] sm:$0xff]
        %v1358 = vsel %vm969, %v1225, 0
        %v1361 = vsel %vm969, %v1226, 0
        %v1364 = vsel %vm969, %v1227, 0
        %v1367 = vsel %vm969, %v1228, 0
        %v1370 = vsel %vm969, %v1229, 0
        %v1373 = vsel %vm969, %v1230, 0
        %v1376 = vsel %vm969, %v1231, 0
        %v1379 = vsel %vm969, %v1232, 0
        %v1382 = vsel %vm969, %v1233, 0
        %v1385 = vsel %vm969, %v1234, 0
        %v1388 = vsel %vm969, %v1235, 0
        %v1391 = vsel %vm969, %v1236, 0
        %v1394 = vsel %vm969, %v1237, 0
        %v1397 = vsel %vm969, %v1238, 0
        %v1400 = vsel %vm969, %v1239, 0
        %v1403 = vsel %vm969, %v1240, 0
        %v1406 = vsel %vm969, %v1241, 0
        %v1409 = vsel %vm969, %v1242, 0
        %v1412 = vsel %vm969, %v1243, 0
        %v1415 = vsel %vm969, %v1244, 0
        %v1418 = vsel %vm969, %v1245, 0
        %v1421 = vsel %vm969, %v1246, 0
        %v1424 = vsel %vm969, %v1247, 0
        %v1427 = vsel %vm969, %v1248, 0
        %v1430 = vsel %vm969, %v1249, 0
        %v1433 = vsel %vm969, %v1250, 0
        %v1436 = vsel %vm969, %v1251, 0
        %v1439 = vsel %vm969, %v1252, 0
        %v1442 = vsel %vm969, %v1253, 0
        %v1445 = vsel %vm969, %v1254, 0
        %v1448 = vsel %vm969, %v1255, 0
        %v1451 = vsel %vm969, %v1256, 0
        %v1454 = vsel %vm969, %v1257, 0
        %v1457 = vsel %vm969, %v1258, 0
        %v1460 = vsel %vm969, %v1259, 0
        %v1463 = vsel %vm969, %v1260, 0
        %v1466 = vsel %vm969, %v1261, 0
        %v1469 = vsel %vm969, %v1262, 0
        %v1472 = vsel %vm969, %v1263, 0
        %v1475 = vsel %vm969, %v1264, 0
        %v1478 = vsel %vm969, %v1265, 0
        %v1481 = vsel %vm969, %v1266, 0
        %v1484 = vsel %vm969, %v1267, 0
        %v1487 = vsel %vm969, %v1268, 0
        %v1490 = vsel %vm969, %v1269, 0
        %v1493 = vsel %vm969, %v1270, 0
        %v1496 = vsel %vm969, %v1271, 0
        %v1499 = vsel %vm969, %v1272, 0
        %v1502 = vsel %vm969, %v1273, 0
        %v1505 = vsel %vm969, %v1274, 0
        %v1508 = vsel %vm969, %v1275, 0
        %v1511 = vsel %vm969, %v1276, 0
        %v1514 = vsel %vm969, %v1277, 0
        %v1517 = vsel %vm969, %v1278, 0
        %v1520 = vsel %vm969, %v1279, 0
        %v1523 = vsel %vm969, %v1280, 0
        %v1526 = vsel %vm969, %v1281, 0
        %v1529 = vsel %vm969, %v1282, 0
        %v1532 = vsel %vm969, %v1283, 0
        %v1535 = vsel %vm969, %v1284, 0
        %v1538 = vsel %vm969, %v1285, 0
        %v1541 = vsel %vm969, %v1286, 0
        %v1544 = vsel %vm969, %v1287, 0
        %v1547 = vsel %vm969, %v1288, 0
        %v1550 = vsel %vm969, %v1289, 0
        %v1553 = vsel %vm969, %v1290, 0
        %v1556 = vsel %vm969, %v1291, 0
        %v1559 = vsel %vm969, %v1292, 0
        %v1562 = vsel %vm969, %v1293, 0
        %v1565 = vsel %vm969, %v1294, 0
        %v1568 = vsel %vm969, %v1295, 0
        %v1571 = vsel %vm969, %v1296, 0
        %v1574 = vsel %vm969, %v1297, 0
        %v1577 = vsel %vm969, %v1298, 0
        %v1580 = vsel %vm969, %v1299, 0
        %v1583 = vsel %vm969, %v1300, 0
        %v1586 = vsel %vm969, %v1301, 0
        %v1589 = vsel %vm969, %v1302, 0
        %v1592 = vsel %vm969, %v1303, 0
        %v1595 = vsel %vm969, %v1304, 0
        %v1598 = vsel %vm969, %v1305, 0
        %v1601 = vsel %vm969, %v1306, 0
        %v1604 = vsel %vm969, %v1307, 0
        %v1607 = vsel %vm969, %v1308, 0
        %v1610 = vsel %vm969, %v1309, 0
        %v1613 = vsel %vm969, %v1310, 0
        %v1616 = vsel %vm969, %v1311, 0
        %v1619 = vsel %vm969, %v1312, 0
        %v1622 = vsel %vm969, %v1313, 0
        %v1625 = vsel %vm969, %v1314, 0
        %v1628 = vsel %vm969, %v1315, 0
        %v1631 = vsel %vm969, %v1316, 0
        %v1634 = vsel %vm969, %v1317, 0
        %v1637 = vsel %vm969, %v1318, 0
        %v1640 = vsel %vm969, %v1319, 0
        %v1643 = vsel %vm969, %v1320, 0
        %v1646 = vsel %vm969, %v1321, 0
        %v1649 = vsel %vm969, %v1322, 0
        %v1652 = vsel %vm969, %v1323, 0
        %v1655 = vsel %vm969, %v1324, 0
        %v1658 = vsel %vm969, %v1325, 0
        %v1661 = vsel %vm969, %v1326, 0
        %v1664 = vsel %vm969, %v1327, 0
        %v1667 = vsel %vm969, %v1328, 0
        %v1670 = vsel %vm969, %v1329, 0
        %v1673 = vsel %vm969, %v1330, 0
        %v1676 = vsel %vm969, %v1331, 0
        %v1679 = vsel %vm969, %v1332, 0
        %v1682 = vsel %vm969, %v1333, 0
        %v1685 = vsel %vm969, %v1334, 0
        %v1688 = vsel %vm969, %v1335, 0
        %v1691 = vsel %vm969, %v1336, 0
        %v1694 = vsel %vm969, %v1337, 0
        %v1697 = vsel %vm969, %v1338, 0
        %v1700 = vsel %vm969, %v1339, 0
        %v1703 = vsel %vm969, %v1340, 0
        %v1706 = vsel %vm969, %v1341, 0
        %v1709 = vsel %vm969, %v1342, 0
        %v1712 = vsel %vm969, %v1343, 0
        %v1715 = vsel %vm969, %v1344, 0
        %v1718 = vsel %vm969, %v1345, 0
        %v1721 = vsel %vm969, %v1346, 0
        %v1724 = vsel %vm969, %v1347, 0
        %v1727 = vsel %vm969, %v1348, 0
        %v1730 = vsel %vm969, %v1349, 0
        %v1733 = vsel %vm969, %v1350, 0
        %v1736 = vsel %vm969, %v1351, 0
        %v1739 = vsel %vm969, %v1352, 0
        %1741 = vmatprep.subr.mxu0 0.0
        %1742 = vmatpush1.msra.mxu0 %v1353
        %1743 = vmatprep.subr.mxu0 0.0
        %1744 = vmatpush1.msra.mxu0 %v1354
        %1745 = vmatprep.subr.mxu0 0.0
        %1746 = vmatpush1.msra.mxu0 %v1355
        %1747 = vmatprep.subr.mxu0 0.0
        %1748 = vmatpush1.msra.mxu0 %v1356
        %1749 = vmatprep.subr.mxu0 0.0
        %1750 = vmatpush1.msra.mxu0 0.0
        %1751 = vmatprep.subr.mxu0 0.0
        %1752 = vmatpush1.msra.mxu0 0.0
        %1753 = vmatprep.subr.mxu0 0.0
        %1754 = vmatpush1.msra.mxu0 0.0
        %1755 = vmatprep.subr.mxu0 0.0
        %1756 = vmatpush1.msra.mxu0 0.0
        %1757 = vmatprep.subr.mxu0 0.0
        %1758 = vmatpush1.msra.mxu0 0.0
        %1759 = vmatprep.subr.mxu0 0.0
        %1760 = vmatpush1.msra.mxu0 0.0
        %1761 = vmatprep.subr.mxu0 0.0
        %1762 = vmatpush1.msra.mxu0 0.0
        %1763 = vmatprep.subr.mxu0 0.0
        %1764 = vmatpush1.msra.mxu0 0.0
        %1765 = vmatprep.subr.mxu0 0.0
        %1766 = vmatpush1.msra.mxu0 0.0
        %1767 = vmatprep.subr.mxu0 0.0
        %1768 = vmatpush1.msra.mxu0 0.0
        %1769 = vmatprep.subr.mxu0 0.0
        %1770 = vmatpush1.msra.mxu0 0.0
        %1771 = vmatprep.subr.mxu0 0.0
        %1772 = vmatpush1.msra.mxu0 0.0
        %1773 = vmatprep.subr.mxu0 0.0
        %1774 = vmatpush1.msra.mxu0 0.0
        %1775 = vmatprep.subr.mxu0 0.0
        %1776 = vmatpush1.msra.mxu0 0.0
        %1777 = vmatprep.subr.mxu0 0.0
        %1778 = vmatpush1.msra.mxu0 0.0
        %1779 = vmatprep.subr.mxu0 0.0
        %1780 = vmatpush1.msra.mxu0 0.0
        %1781 = vmatprep.subr.mxu0 0.0
        %1782 = vmatpush1.msra.mxu0 0.0
        %1783 = vmatprep.subr.mxu0 0.0
        %1784 = vmatpush1.msra.mxu0 0.0
        %1785 = vmatprep.subr.mxu0 0.0
        %1786 = vmatpush1.msra.mxu0 0.0
        %1787 = vmatprep.subr.mxu0 0.0
        %1788 = vmatpush1.msra.mxu0 0.0
        %1789 = vmatprep.subr.mxu0 0.0
        %1790 = vmatpush1.msra.mxu0 0.0
        %1791 = vmatprep.subr.mxu0 0.0
        %1792 = vmatpush1.msra.mxu0 0.0
        %1793 = vmatprep.subr.mxu0 0.0
        %1794 = vmatpush1.msra.mxu0 0.0
        %1795 = vmatprep.subr.mxu0 0.0
        %1796 = vmatpush1.msra.mxu0 0.0
        %1797 = vmatprep.subr.mxu0 0.0
        %1798 = vmatpush1.msra.mxu0 0.0
        %1799 = vmatprep.subr.mxu0 0.0
        %1800 = vmatpush1.msra.mxu0 0.0
        %1801 = vmatprep.subr.mxu0 0.0
        %1802 = vmatpush1.msra.mxu0 0.0
        %1803 = vmatprep.subr.mxu0 0.0
        %1804 = vmatpush1.msra.mxu0 0.0
        %1805 = vmatprep.mubr.f32.mxu0 0.0
        %1806 = vmatmul.mubr.f32.gmra.mrb[0].mxu0 %v1358
        %v1807 = vpop.f32.mrb[0].mxu0
        %v1808 = vadd.f32 0.0, %v1807
        %v1809 = vpop.f32.mrb[0].mxu0
        %1810 = vmatprep.mubr.f32.mxu0 0.0
        %1811 = vmatmul.mubr.f32.gmra.mrb[0].mxu0 %v1361
        %v1812 = vpop.f32.mrb[0].mxu0
        %v1813 = vadd.f32 0.0, %v1812
        %v1814 = vpop.f32.mrb[0].mxu0
        %1815 = vmatprep.mubr.f32.mxu0 0.0
        %1816 = vmatmul.mubr.f32.gmra.mrb[0].mxu0 %v1364
        %v1817 = vpop.f32.mrb[0].mxu0
        %v1818 = vadd.f32 0.0, %v1817
        %v1819 = vpop.f32.mrb[0].mxu0
        %1820 = vmatprep.mubr.f32.mxu0 0.0
        %1821 = vmatmul.mubr.f32.gmra.mrb[0].mxu0 %v1367
        %v1822 = vpop.f32.mrb[0].mxu0
        %v1823 = vadd.f32 0.0, %v1822
        %v1824 = vpop.f32.mrb[0].mxu0
        %1825 = vmatprep.mubr.f32.mxu0 0.0
        %1826 = vmatmul.mubr.f32.gmra.mrb[0].mxu0 %v1370
        %v1827 = vpop.f32.mrb[0].mxu0
        %v1828 = vadd.f32 0.0, %v1827
        %v1829 = vpop.f32.mrb[0].mxu0
        %1830 = vmatprep.mubr.f32.mxu0 0.0
        %1831 = vmatmul.mubr.f32.gmra.mrb[0].mxu0 %v1373
        %v1832 = vpop.f32.mrb[0].mxu0
        %v1833 = vadd.f32 0.0, %v1832
        %v1834 = vpop.f32.mrb[0].mxu0
        %1835 = vmatprep.mubr.f32.mxu0 0.0
        %1836 = vmatmul.mubr.f32.gmra.mrb[0].mxu0 %v1376
        %v1837 = vpop.f32.mrb[0].mxu0
        %v1838 = vadd.f32 0.0, %v1837
        %v1839 = vpop.f32.mrb[0].mxu0
        %1840 = vmatprep.mubr.f32.mxu0 0.0
        %1841 = vmatmul.mubr.f32.gmra.mrb[0].mxu0 %v1379
        %v1842 = vpop.f32.mrb[0].mxu0
        %v1843 = vadd.f32 0.0, %v1842
        %v1844 = vpop.f32.mrb[0].mxu0
        %1845 = vmatprep.mubr.f32.mxu0 0.0
        %1846 = vmatmul.mubr.f32.gmra.mrb[0].mxu0 %v1382
        %v1847 = vpop.f32.mrb[0].mxu0
        %v1848 = vadd.f32 0.0, %v1847
        %v1849 = vpop.f32.mrb[0].mxu0
        %1850 = vmatprep.mubr.f32.mxu0 0.0
        %1851 = vmatmul.mubr.f32.gmra.mrb[0].mxu0 %v1385
        %v1852 = vpop.f32.mrb[0].mxu0
        %v1853 = vadd.f32 0.0, %v1852
        %v1854 = vpop.f32.mrb[0].mxu0
        %1855 = vmatprep.mubr.f32.mxu0 0.0
        %1856 = vmatmul.mubr.f32.gmra.mrb[0].mxu0 %v1388
        %v1857 = vpop.f32.mrb[0].mxu0
        %v1858 = vadd.f32 0.0, %v1857
        %v1859 = vpop.f32.mrb[0].mxu0
        %1860 = vmatprep.mubr.f32.mxu0 0.0
        %1861 = vmatmul.mubr.f32.gmra.mrb[0].mxu0 %v1391
        %v1862 = vpop.f32.mrb[0].mxu0
        %v1863 = vadd.f32 0.0, %v1862
        %v1864 = vpop.f32.mrb[0].mxu0
        %1865 = vmatprep.mubr.f32.mxu0 0.0
        %1866 = vmatmul.mubr.f32.gmra.mrb[0].mxu0 %v1394
        %v1867 = vpop.f32.mrb[0].mxu0
        %v1868 = vadd.f32 0.0, %v1867
        %v1869 = vpop.f32.mrb[0].mxu0
        %1870 = vmatprep.mubr.f32.mxu0 0.0
        %1871 = vmatmul.mubr.f32.gmra.mrb[0].mxu0 %v1397
        %v1872 = vpop.f32.mrb[0].mxu0
        %v1873 = vadd.f32 0.0, %v1872
        %v1874 = vpop.f32.mrb[0].mxu0
        %1875 = vmatprep.mubr.f32.mxu0 0.0
        %1876 = vmatmul.mubr.f32.gmra.mrb[0].mxu0 %v1400
        %v1877 = vpop.f32.mrb[0].mxu0
        %v1878 = vadd.f32 0.0, %v1877
        %v1879 = vpop.f32.mrb[0].mxu0
        %1880 = vmatprep.mubr.f32.mxu0 0.0
        %1881 = vmatmul.mubr.f32.gmra.mrb[0].mxu0 %v1403
        %v1882 = vpop.f32.mrb[0].mxu0
        %v1883 = vadd.f32 0.0, %v1882
        %v1884 = vpop.f32.mrb[0].mxu0
        %1885 = vmatprep.mubr.f32.mxu0 0.0
        %1886 = vmatmul.mubr.f32.gmra.mrb[0].mxu0 %v1406
        %v1887 = vpop.f32.mrb[0].mxu0
        %v1888 = vadd.f32 0.0, %v1887
        %v1889 = vpop.f32.mrb[0].mxu0
        %1890 = vmatprep.mubr.f32.mxu0 0.0
        %1891 = vmatmul.mubr.f32.gmra.mrb[0].mxu0 %v1409
        %v1892 = vpop.f32.mrb[0].mxu0
        %v1893 = vadd.f32 0.0, %v1892
        %v1894 = vpop.f32.mrb[0].mxu0
        %1895 = vmatprep.mubr.f32.mxu0 0.0
        %1896 = vmatmul.mubr.f32.gmra.mrb[0].mxu0 %v1412
        %v1897 = vpop.f32.mrb[0].mxu0
        %v1898 = vadd.f32 0.0, %v1897
        %v1899 = vpop.f32.mrb[0].mxu0
        %1900 = vmatprep.mubr.f32.mxu0 0.0
        %1901 = vmatmul.mubr.f32.gmra.mrb[0].mxu0 %v1415
        %v1902 = vpop.f32.mrb[0].mxu0
        %v1903 = vadd.f32 0.0, %v1902
        %v1904 = vpop.f32.mrb[0].mxu0
        %1905 = vmatprep.mubr.f32.mxu0 0.0
        %1906 = vmatmul.mubr.f32.gmra.mrb[0].mxu0 %v1418
        %v1907 = vpop.f32.mrb[0].mxu0
        %v1908 = vadd.f32 0.0, %v1907
        %v1909 = vpop.f32.mrb[0].mxu0
        %1910 = vmatprep.mubr.f32.mxu0 0.0
        %1911 = vmatmul.mubr.f32.gmra.mrb[0].mxu0 %v1421
        %v1912 = vpop.f32.mrb[0].mxu0
        %v1913 = vadd.f32 0.0, %v1912
        %v1914 = vpop.f32.mrb[0].mxu0
        %1915 = vmatprep.mubr.f32.mxu0 0.0
        %1916 = vmatmul.mubr.f32.gmra.mrb[0].mxu0 %v1424
        %v1917 = vpop.f32.mrb[0].mxu0
        %v1918 = vadd.f32 0.0, %v1917
        %v1919 = vpop.f32.mrb[0].mxu0
        %1920 = vmatprep.mubr.f32.mxu0 0.0
        %1921 = vmatmul.mubr.f32.gmra.mrb[0].mxu0 %v1427
        %v1922 = vpop.f32.mrb[0].mxu0
        %v1923 = vadd.f32 0.0, %v1922
        %v1924 = vpop.f32.mrb[0].mxu0
        %1925 = vmatprep.mubr.f32.mxu0 0.0
        %1926 = vmatmul.mubr.f32.gmra.mrb[0].mxu0 %v1430
        %v1927 = vpop.f32.mrb[0].mxu0
        %v1928 = vadd.f32 0.0, %v1927
        %v1929 = vpop.f32.mrb[0].mxu0
        %1930 = vmatprep.mubr.f32.mxu0 0.0
        %1931 = vmatmul.mubr.f32.gmra.mrb[0].mxu0 %v1433
        %v1932 = vpop.f32.mrb[0].mxu0
        %v1933 = vadd.f32 0.0, %v1932
        %v1934 = vpop.f32.mrb[0].mxu0
        %1935 = vmatprep.mubr.f32.mxu0 0.0
        %1936 = vmatmul.mubr.f32.gmra.mrb[0].mxu0 %v1436
        %v1937 = vpop.f32.mrb[0].mxu0
        %v1938 = vadd.f32 0.0, %v1937
        %v1939 = vpop.f32.mrb[0].mxu0
        %1940 = vmatprep.mubr.f32.mxu0 0.0
        %1941 = vmatmul.mubr.f32.gmra.mrb[0].mxu0 %v1439
        %v1942 = vpop.f32.mrb[0].mxu0
        %v1943 = vadd.f32 0.0, %v1942
        %v1944 = vpop.f32.mrb[0].mxu0
        %1945 = vmatprep.mubr.f32.mxu0 0.0
        %1946 = vmatmul.mubr.f32.gmra.mrb[0].mxu0 %v1442
        %v1947 = vpop.f32.mrb[0].mxu0
        %v1948 = vadd.f32 0.0, %v1947
        %v1949 = vpop.f32.mrb[0].mxu0
        %1950 = vmatprep.mubr.f32.mxu0 0.0
        %1951 = vmatmul.mubr.f32.gmra.mrb[0].mxu0 %v1445
        %v1952 = vpop.f32.mrb[0].mxu0
        %v1953 = vadd.f32 0.0, %v1952
        %v1954 = vpop.f32.mrb[0].mxu0
        %1955 = vmatprep.mubr.f32.mxu0 0.0
        %1956 = vmatmul.mubr.f32.gmra.mrb[0].mxu0 %v1448
        %v1957 = vpop.f32.mrb[0].mxu0
        %v1958 = vadd.f32 0.0, %v1957
        %v1959 = vpop.f32.mrb[0].mxu0
        %1960 = vmatprep.mubr.f32.mxu0 0.0
        %1961 = vmatmul.mubr.f32.gmra.mrb[0].mxu0 %v1451
        %v1962 = vpop.f32.mrb[0].mxu0
        %v1963 = vadd.f32 0.0, %v1962
        %v1964 = vpop.f32.mrb[0].mxu0
        %1965 = vmatprep.mubr.f32.mxu0 0.0
        %1966 = vmatmul.mubr.f32.gmra.mrb[0].mxu0 %v1454
        %v1967 = vpop.f32.mrb[0].mxu0
        %v1968 = vadd.f32 0.0, %v1967
        %v1969 = vpop.f32.mrb[0].mxu0
        %1970 = vmatprep.mubr.f32.mxu0 0.0
        %1971 = vmatmul.mubr.f32.gmra.mrb[0].mxu0 %v1457
        %v1972 = vpop.f32.mrb[0].mxu0
        %v1973 = vadd.f32 0.0, %v1972
        %v1974 = vpop.f32.mrb[0].mxu0
        %1975 = vmatprep.mubr.f32.mxu0 0.0
        %1976 = vmatmul.mubr.f32.gmra.mrb[0].mxu0 %v1460
        %v1977 = vpop.f32.mrb[0].mxu0
        %v1978 = vadd.f32 0.0, %v1977
        %v1979 = vpop.f32.mrb[0].mxu0
        %1980 = vmatprep.mubr.f32.mxu0 0.0
        %1981 = vmatmul.mubr.f32.gmra.mrb[0].mxu0 %v1463
        %v1982 = vpop.f32.mrb[0].mxu0
        %v1983 = vadd.f32 0.0, %v1982
        %v1984 = vpop.f32.mrb[0].mxu0
        %1985 = vmatprep.mubr.f32.mxu0 0.0
        %1986 = vmatmul.mubr.f32.gmra.mrb[0].mxu0 %v1466
        %v1987 = vpop.f32.mrb[0].mxu0
        %v1988 = vadd.f32 0.0, %v1987
        %v1989 = vpop.f32.mrb[0].mxu0
        %1990 = vmatprep.mubr.f32.mxu0 0.0
        %1991 = vmatmul.mubr.f32.gmra.mrb[0].mxu0 %v1469
        %v1992 = vpop.f32.mrb[0].mxu0
        %v1993 = vadd.f32 0.0, %v1992
        %v1994 = vpop.f32.mrb[0].mxu0
        %1995 = vmatprep.mubr.f32.mxu0 0.0
        %1996 = vmatmul.mubr.f32.gmra.mrb[0].mxu0 %v1472
        %v1997 = vpop.f32.mrb[0].mxu0
        %v1998 = vadd.f32 0.0, %v1997
        %v1999 = vpop.f32.mrb[0].mxu0
        %2000 = vmatprep.mubr.f32.mxu0 0.0
        %2001 = vmatmul.mubr.f32.gmra.mrb[0].mxu0 %v1475
        %v2002 = vpop.f32.mrb[0].mxu0
        %v2003 = vadd.f32 0.0, %v2002
        %v2004 = vpop.f32.mrb[0].mxu0
        %2005 = vmatprep.mubr.f32.mxu0 0.0
        %2006 = vmatmul.mubr.f32.gmra.mrb[0].mxu0 %v1478
        %v2007 = vpop.f32.mrb[0].mxu0
        %v2008 = vadd.f32 0.0, %v2007
        %v2009 = vpop.f32.mrb[0].mxu0
        %2010 = vmatprep.mubr.f32.mxu0 0.0
        %2011 = vmatmul.mubr.f32.gmra.mrb[0].mxu0 %v1481
        %v2012 = vpop.f32.mrb[0].mxu0
        %v2013 = vadd.f32 0.0, %v2012
        %v2014 = vpop.f32.mrb[0].mxu0
        %2015 = vmatprep.mubr.f32.mxu0 0.0
        %2016 = vmatmul.mubr.f32.gmra.mrb[0].mxu0 %v1484
        %v2017 = vpop.f32.mrb[0].mxu0
        %v2018 = vadd.f32 0.0, %v2017
        %v2019 = vpop.f32.mrb[0].mxu0
        %2020 = vmatprep.mubr.f32.mxu0 0.0
        %2021 = vmatmul.mubr.f32.gmra.mrb[0].mxu0 %v1487
        %v2022 = vpop.f32.mrb[0].mxu0
        %v2023 = vadd.f32 0.0, %v2022
        %v2024 = vpop.f32.mrb[0].mxu0
        %2025 = vmatprep.mubr.f32.mxu0 0.0
        %2026 = vmatmul.mubr.f32.gmra.mrb[0].mxu0 %v1490
        %v2027 = vpop.f32.mrb[0].mxu0
        %v2028 = vadd.f32 0.0, %v2027
        %v2029 = vpop.f32.mrb[0].mxu0
        %2030 = vmatprep.mubr.f32.mxu0 0.0
        %2031 = vmatmul.mubr.f32.gmra.mrb[0].mxu0 %v1493
        %v2032 = vpop.f32.mrb[0].mxu0
        %v2033 = vadd.f32 0.0, %v2032
        %v2034 = vpop.f32.mrb[0].mxu0
        %2035 = vmatprep.mubr.f32.mxu0 0.0
        %2036 = vmatmul.mubr.f32.gmra.mrb[0].mxu0 %v1496
        %v2037 = vpop.f32.mrb[0].mxu0
        %v2038 = vadd.f32 0.0, %v2037
        %v2039 = vpop.f32.mrb[0].mxu0
        %2040 = vmatprep.mubr.f32.mxu0 0.0
        %2041 = vmatmul.mubr.f32.gmra.mrb[0].mxu0 %v1499
        %v2042 = vpop.f32.mrb[0].mxu0
        %v2043 = vadd.f32 0.0, %v2042
        %v2044 = vpop.f32.mrb[0].mxu0
        %2045 = vmatprep.mubr.f32.mxu0 0.0
        %2046 = vmatmul.mubr.f32.gmra.mrb[0].mxu0 %v1502
        %v2047 = vpop.f32.mrb[0].mxu0
        %v2048 = vadd.f32 0.0, %v2047
        %v2049 = vpop.f32.mrb[0].mxu0
        %2050 = vmatprep.mubr.f32.mxu0 0.0
        %2051 = vmatmul.mubr.f32.gmra.mrb[0].mxu0 %v1505
        %v2052 = vpop.f32.mrb[0].mxu0
        %v2053 = vadd.f32 0.0, %v2052
        %v2054 = vpop.f32.mrb[0].mxu0
        %2055 = vmatprep.mubr.f32.mxu0 0.0
        %2056 = vmatmul.mubr.f32.gmra.mrb[0].mxu0 %v1508
        %v2057 = vpop.f32.mrb[0].mxu0
        %v2058 = vadd.f32 0.0, %v2057
        %v2059 = vpop.f32.mrb[0].mxu0
        %2060 = vmatprep.mubr.f32.mxu0 0.0
        %2061 = vmatmul.mubr.f32.gmra.mrb[0].mxu0 %v1511
        %v2062 = vpop.f32.mrb[0].mxu0
        %v2063 = vadd.f32 0.0, %v2062
        %v2064 = vpop.f32.mrb[0].mxu0
        %2065 = vmatprep.mubr.f32.mxu0 0.0
        %2066 = vmatmul.mubr.f32.gmra.mrb[0].mxu0 %v1514
        %v2067 = vpop.f32.mrb[0].mxu0
        %v2068 = vadd.f32 0.0, %v2067
        %v2069 = vpop.f32.mrb[0].mxu0
        %2070 = vmatprep.mubr.f32.mxu0 0.0
        %2071 = vmatmul.mubr.f32.gmra.mrb[0].mxu0 %v1517
        %v2072 = vpop.f32.mrb[0].mxu0
        %v2073 = vadd.f32 0.0, %v2072
        %v2074 = vpop.f32.mrb[0].mxu0
        %2075 = vmatprep.mubr.f32.mxu0 0.0
        %2076 = vmatmul.mubr.f32.gmra.mrb[0].mxu0 %v1520
        %v2077 = vpop.f32.mrb[0].mxu0
        %v2078 = vadd.f32 0.0, %v2077
        %v2079 = vpop.f32.mrb[0].mxu0
        %2080 = vmatprep.mubr.f32.mxu0 0.0
        %2081 = vmatmul.mubr.f32.gmra.mrb[0].mxu0 %v1523
        %v2082 = vpop.f32.mrb[0].mxu0
        %v2083 = vadd.f32 0.0, %v2082
        %v2084 = vpop.f32.mrb[0].mxu0
        %2085 = vmatprep.mubr.f32.mxu0 0.0
        %2086 = vmatmul.mubr.f32.gmra.mrb[0].mxu0 %v1526
        %v2087 = vpop.f32.mrb[0].mxu0
        %v2088 = vadd.f32 0.0, %v2087
        %v2089 = vpop.f32.mrb[0].mxu0
        %2090 = vmatprep.mubr.f32.mxu0 0.0
        %2091 = vmatmul.mubr.f32.gmra.mrb[0].mxu0 %v1529
        %v2092 = vpop.f32.mrb[0].mxu0
        %v2093 = vadd.f32 0.0, %v2092
        %v2094 = vpop.f32.mrb[0].mxu0
        %2095 = vmatprep.mubr.f32.mxu0 0.0
        %2096 = vmatmul.mubr.f32.gmra.mrb[0].mxu0 %v1532
        %v2097 = vpop.f32.mrb[0].mxu0
        %v2098 = vadd.f32 0.0, %v2097
        %v2099 = vpop.f32.mrb[0].mxu0
        %2100 = vmatprep.mubr.f32.mxu0 0.0
        %2101 = vmatmul.mubr.f32.gmra.mrb[0].mxu0 %v1535
        %v2102 = vpop.f32.mrb[0].mxu0
        %v2103 = vadd.f32 0.0, %v2102
        %v2104 = vpop.f32.mrb[0].mxu0
        %2105 = vmatprep.mubr.f32.mxu0 0.0
        %2106 = vmatmul.mubr.f32.gmra.mrb[0].mxu0 %v1538
        %v2107 = vpop.f32.mrb[0].mxu0
        %v2108 = vadd.f32 0.0, %v2107
        %v2109 = vpop.f32.mrb[0].mxu0
        %2110 = vmatprep.mubr.f32.mxu0 0.0
        %2111 = vmatmul.mubr.f32.gmra.mrb[0].mxu0 %v1541
        %v2112 = vpop.f32.mrb[0].mxu0
        %v2113 = vadd.f32 0.0, %v2112
        %v2114 = vpop.f32.mrb[0].mxu0
        %2115 = vmatprep.mubr.f32.mxu0 0.0
        %2116 = vmatmul.mubr.f32.gmra.mrb[0].mxu0 %v1544
        %v2117 = vpop.f32.mrb[0].mxu0
        %v2118 = vadd.f32 0.0, %v2117
        %v2119 = vpop.f32.mrb[0].mxu0
        %2120 = vmatprep.mubr.f32.mxu0 0.0
        %2121 = vmatmul.mubr.f32.gmra.mrb[0].mxu0 %v1547
        %v2122 = vpop.f32.mrb[0].mxu0
        %v2123 = vadd.f32 0.0, %v2122
        %v2124 = vpop.f32.mrb[0].mxu0
        %2125 = vmatprep.mubr.f32.mxu0 0.0
        %2126 = vmatmul.mubr.f32.gmra.mrb[0].mxu0 %v1550
        %v2127 = vpop.f32.mrb[0].mxu0
        %v2128 = vadd.f32 0.0, %v2127
        %v2129 = vpop.f32.mrb[0].mxu0
        %2130 = vmatprep.mubr.f32.mxu0 0.0
        %2131 = vmatmul.mubr.f32.gmra.mrb[0].mxu0 %v1553
        %v2132 = vpop.f32.mrb[0].mxu0
        %v2133 = vadd.f32 0.0, %v2132
        %v2134 = vpop.f32.mrb[0].mxu0
        %2135 = vmatprep.mubr.f32.mxu0 0.0
        %2136 = vmatmul.mubr.f32.gmra.mrb[0].mxu0 %v1556
        %v2137 = vpop.f32.mrb[0].mxu0
        %v2138 = vadd.f32 0.0, %v2137
        %v2139 = vpop.f32.mrb[0].mxu0
        %2140 = vmatprep.mubr.f32.mxu0 0.0
        %2141 = vmatmul.mubr.f32.gmra.mrb[0].mxu0 %v1559
        %v2142 = vpop.f32.mrb[0].mxu0
        %v2143 = vadd.f32 0.0, %v2142
        %v2144 = vpop.f32.mrb[0].mxu0
        %2145 = vmatprep.mubr.f32.mxu0 0.0
        %2146 = vmatmul.mubr.f32.gmra.mrb[0].mxu0 %v1562
        %v2147 = vpop.f32.mrb[0].mxu0
        %v2148 = vadd.f32 0.0, %v2147
        %v2149 = vpop.f32.mrb[0].mxu0
        %2150 = vmatprep.mubr.f32.mxu0 0.0
        %2151 = vmatmul.mubr.f32.gmra.mrb[0].mxu0 %v1565
        %v2152 = vpop.f32.mrb[0].mxu0
        %v2153 = vadd.f32 0.0, %v2152
        %v2154 = vpop.f32.mrb[0].mxu0
        %2155 = vmatprep.mubr.f32.mxu0 0.0
        %2156 = vmatmul.mubr.f32.gmra.mrb[0].mxu0 %v1568
        %v2157 = vpop.f32.mrb[0].mxu0
        %v2158 = vadd.f32 0.0, %v2157
        %v2159 = vpop.f32.mrb[0].mxu0
        %2160 = vmatprep.mubr.f32.mxu0 0.0
        %2161 = vmatmul.mubr.f32.gmra.mrb[0].mxu0 %v1571
        %v2162 = vpop.f32.mrb[0].mxu0
        %v2163 = vadd.f32 0.0, %v2162
        %v2164 = vpop.f32.mrb[0].mxu0
        %2165 = vmatprep.mubr.f32.mxu0 0.0
        %2166 = vmatmul.mubr.f32.gmra.mrb[0].mxu0 %v1574
        %v2167 = vpop.f32.mrb[0].mxu0
        %v2168 = vadd.f32 0.0, %v2167
        %v2169 = vpop.f32.mrb[0].mxu0
        %2170 = vmatprep.mubr.f32.mxu0 0.0
        %2171 = vmatmul.mubr.f32.gmra.mrb[0].mxu0 %v1577
        %v2172 = vpop.f32.mrb[0].mxu0
        %v2173 = vadd.f32 0.0, %v2172
        %v2174 = vpop.f32.mrb[0].mxu0
        %2175 = vmatprep.mubr.f32.mxu0 0.0
        %2176 = vmatmul.mubr.f32.gmra.mrb[0].mxu0 %v1580
        %v2177 = vpop.f32.mrb[0].mxu0
        %v2178 = vadd.f32 0.0, %v2177
        %v2179 = vpop.f32.mrb[0].mxu0
        %2180 = vmatprep.mubr.f32.mxu0 0.0
        %2181 = vmatmul.mubr.f32.gmra.mrb[0].mxu0 %v1583
        %v2182 = vpop.f32.mrb[0].mxu0
        %v2183 = vadd.f32 0.0, %v2182
        %v2184 = vpop.f32.mrb[0].mxu0
        %2185 = vmatprep.mubr.f32.mxu0 0.0
        %2186 = vmatmul.mubr.f32.gmra.mrb[0].mxu0 %v1586
        %v2187 = vpop.f32.mrb[0].mxu0
        %v2188 = vadd.f32 0.0, %v2187
        %v2189 = vpop.f32.mrb[0].mxu0
        %2190 = vmatprep.mubr.f32.mxu0 0.0
        %2191 = vmatmul.mubr.f32.gmra.mrb[0].mxu0 %v1589
        %v2192 = vpop.f32.mrb[0].mxu0
        %v2193 = vadd.f32 0.0, %v2192
        %v2194 = vpop.f32.mrb[0].mxu0
        %2195 = vmatprep.mubr.f32.mxu0 0.0
        %2196 = vmatmul.mubr.f32.gmra.mrb[0].mxu0 %v1592
        %v2197 = vpop.f32.mrb[0].mxu0
        %v2198 = vadd.f32 0.0, %v2197
        %v2199 = vpop.f32.mrb[0].mxu0
        %2200 = vmatprep.mubr.f32.mxu0 0.0
        %2201 = vmatmul.mubr.f32.gmra.mrb[0].mxu0 %v1595
        %v2202 = vpop.f32.mrb[0].mxu0
        %v2203 = vadd.f32 0.0, %v2202
        %v2204 = vpop.f32.mrb[0].mxu0
        %2205 = vmatprep.mubr.f32.mxu0 0.0
        %2206 = vmatmul.mubr.f32.gmra.mrb[0].mxu0 %v1598
        %v2207 = vpop.f32.mrb[0].mxu0
        %v2208 = vadd.f32 0.0, %v2207
        %v2209 = vpop.f32.mrb[0].mxu0
        %2210 = vmatprep.mubr.f32.mxu0 0.0
        %2211 = vmatmul.mubr.f32.gmra.mrb[0].mxu0 %v1601
        %v2212 = vpop.f32.mrb[0].mxu0
        %v2213 = vadd.f32 0.0, %v2212
        %v2214 = vpop.f32.mrb[0].mxu0
        %2215 = vmatprep.mubr.f32.mxu0 0.0
        %2216 = vmatmul.mubr.f32.gmra.mrb[0].mxu0 %v1604
        %v2217 = vpop.f32.mrb[0].mxu0
        %v2218 = vadd.f32 0.0, %v2217
        %v2219 = vpop.f32.mrb[0].mxu0
        %2220 = vmatprep.mubr.f32.mxu0 0.0
        %2221 = vmatmul.mubr.f32.gmra.mrb[0].mxu0 %v1607
        %v2222 = vpop.f32.mrb[0].mxu0
        %v2223 = vadd.f32 0.0, %v2222
        %v2224 = vpop.f32.mrb[0].mxu0
        %2225 = vmatprep.mubr.f32.mxu0 0.0
        %2226 = vmatmul.mubr.f32.gmra.mrb[0].mxu0 %v1610
        %v2227 = vpop.f32.mrb[0].mxu0
        %v2228 = vadd.f32 0.0, %v2227
        %v2229 = vpop.f32.mrb[0].mxu0
        %2230 = vmatprep.mubr.f32.mxu0 0.0
        %2231 = vmatmul.mubr.f32.gmra.mrb[0].mxu0 %v1613
        %v2232 = vpop.f32.mrb[0].mxu0
        %v2233 = vadd.f32 0.0, %v2232
        %v2234 = vpop.f32.mrb[0].mxu0
        %2235 = vmatprep.mubr.f32.mxu0 0.0
        %2236 = vmatmul.mubr.f32.gmra.mrb[0].mxu0 %v1616
        %v2237 = vpop.f32.mrb[0].mxu0
        %v2238 = vadd.f32 0.0, %v2237
        %v2239 = vpop.f32.mrb[0].mxu0
        %2240 = vmatprep.mubr.f32.mxu0 0.0
        %2241 = vmatmul.mubr.f32.gmra.mrb[0].mxu0 %v1619
        %v2242 = vpop.f32.mrb[0].mxu0
        %v2243 = vadd.f32 0.0, %v2242
        %v2244 = vpop.f32.mrb[0].mxu0
        %2245 = vmatprep.mubr.f32.mxu0 0.0
        %2246 = vmatmul.mubr.f32.gmra.mrb[0].mxu0 %v1622
        %v2247 = vpop.f32.mrb[0].mxu0
        %v2248 = vadd.f32 0.0, %v2247
        %v2249 = vpop.f32.mrb[0].mxu0
        %2250 = vmatprep.mubr.f32.mxu0 0.0
        %2251 = vmatmul.mubr.f32.gmra.mrb[0].mxu0 %v1625
        %v2252 = vpop.f32.mrb[0].mxu0
        %v2253 = vadd.f32 0.0, %v2252
        %v2254 = vpop.f32.mrb[0].mxu0
        %2255 = vmatprep.mubr.f32.mxu0 0.0
        %2256 = vmatmul.mubr.f32.gmra.mrb[0].mxu0 %v1628
        %v2257 = vpop.f32.mrb[0].mxu0
        %v2258 = vadd.f32 0.0, %v2257
        %v2259 = vpop.f32.mrb[0].mxu0
        %2260 = vmatprep.mubr.f32.mxu0 0.0
        %2261 = vmatmul.mubr.f32.gmra.mrb[0].mxu0 %v1631
        %v2262 = vpop.f32.mrb[0].mxu0
        %v2263 = vadd.f32 0.0, %v2262
        %v2264 = vpop.f32.mrb[0].mxu0
        %2265 = vmatprep.mubr.f32.mxu0 0.0
        %2266 = vmatmul.mubr.f32.gmra.mrb[0].mxu0 %v1634
        %v2267 = vpop.f32.mrb[0].mxu0
        %v2268 = vadd.f32 0.0, %v2267
        %v2269 = vpop.f32.mrb[0].mxu0
        %2270 = vmatprep.mubr.f32.mxu0 0.0
        %2271 = vmatmul.mubr.f32.gmra.mrb[0].mxu0 %v1637
        %v2272 = vpop.f32.mrb[0].mxu0
        %v2273 = vadd.f32 0.0, %v2272
        %v2274 = vpop.f32.mrb[0].mxu0
        %2275 = vmatprep.mubr.f32.mxu0 0.0
        %2276 = vmatmul.mubr.f32.gmra.mrb[0].mxu0 %v1640
        %v2277 = vpop.f32.mrb[0].mxu0
        %v2278 = vadd.f32 0.0, %v2277
        %v2279 = vpop.f32.mrb[0].mxu0
        %2280 = vmatprep.mubr.f32.mxu0 0.0
        %2281 = vmatmul.mubr.f32.gmra.mrb[0].mxu0 %v1643
        %v2282 = vpop.f32.mrb[0].mxu0
        %v2283 = vadd.f32 0.0, %v2282
        %v2284 = vpop.f32.mrb[0].mxu0
        %2285 = vmatprep.mubr.f32.mxu0 0.0
        %2286 = vmatmul.mubr.f32.gmra.mrb[0].mxu0 %v1646
        %v2287 = vpop.f32.mrb[0].mxu0
        %v2288 = vadd.f32 0.0, %v2287
        %v2289 = vpop.f32.mrb[0].mxu0
        %2290 = vmatprep.mubr.f32.mxu0 0.0
        %2291 = vmatmul.mubr.f32.gmra.mrb[0].mxu0 %v1649
        %v2292 = vpop.f32.mrb[0].mxu0
        %v2293 = vadd.f32 0.0, %v2292
        %v2294 = vpop.f32.mrb[0].mxu0
        %2295 = vmatprep.mubr.f32.mxu0 0.0
        %2296 = vmatmul.mubr.f32.gmra.mrb[0].mxu0 %v1652
        %v2297 = vpop.f32.mrb[0].mxu0
        %v2298 = vadd.f32 0.0, %v2297
        %v2299 = vpop.f32.mrb[0].mxu0
        %2300 = vmatprep.mubr.f32.mxu0 0.0
        %2301 = vmatmul.mubr.f32.gmra.mrb[0].mxu0 %v1655
        %v2302 = vpop.f32.mrb[0].mxu0
        %v2303 = vadd.f32 0.0, %v2302
        %v2304 = vpop.f32.mrb[0].mxu0
        %2305 = vmatprep.mubr.f32.mxu0 0.0
        %2306 = vmatmul.mubr.f32.gmra.mrb[0].mxu0 %v1658
        %v2307 = vpop.f32.mrb[0].mxu0
        %v2308 = vadd.f32 0.0, %v2307
        %v2309 = vpop.f32.mrb[0].mxu0
        %2310 = vmatprep.mubr.f32.mxu0 0.0
        %2311 = vmatmul.mubr.f32.gmra.mrb[0].mxu0 %v1661
        %v2312 = vpop.f32.mrb[0].mxu0
        %v2313 = vadd.f32 0.0, %v2312
        %v2314 = vpop.f32.mrb[0].mxu0
        %2315 = vmatprep.mubr.f32.mxu0 0.0
        %2316 = vmatmul.mubr.f32.gmra.mrb[0].mxu0 %v1664
        %v2317 = vpop.f32.mrb[0].mxu0
        %v2318 = vadd.f32 0.0, %v2317
        %v2319 = vpop.f32.mrb[0].mxu0
        %2320 = vmatprep.mubr.f32.mxu0 0.0
        %2321 = vmatmul.mubr.f32.gmra.mrb[0].mxu0 %v1667
        %v2322 = vpop.f32.mrb[0].mxu0
        %v2323 = vadd.f32 0.0, %v2322
        %v2324 = vpop.f32.mrb[0].mxu0
        %2325 = vmatprep.mubr.f32.mxu0 0.0
        %2326 = vmatmul.mubr.f32.gmra.mrb[0].mxu0 %v1670
        %v2327 = vpop.f32.mrb[0].mxu0
        %v2328 = vadd.f32 0.0, %v2327
        %v2329 = vpop.f32.mrb[0].mxu0
        %2330 = vmatprep.mubr.f32.mxu0 0.0
        %2331 = vmatmul.mubr.f32.gmra.mrb[0].mxu0 %v1673
        %v2332 = vpop.f32.mrb[0].mxu0
        %v2333 = vadd.f32 0.0, %v2332
        %v2334 = vpop.f32.mrb[0].mxu0
        %2335 = vmatprep.mubr.f32.mxu0 0.0
        %2336 = vmatmul.mubr.f32.gmra.mrb[0].mxu0 %v1676
        %v2337 = vpop.f32.mrb[0].mxu0
        %v2338 = vadd.f32 0.0, %v2337
        %v2339 = vpop.f32.mrb[0].mxu0
        %2340 = vmatprep.mubr.f32.mxu0 0.0
        %2341 = vmatmul.mubr.f32.gmra.mrb[0].mxu0 %v1679
        %v2342 = vpop.f32.mrb[0].mxu0
        %v2343 = vadd.f32 0.0, %v2342
        %v2344 = vpop.f32.mrb[0].mxu0
        %2345 = vmatprep.mubr.f32.mxu0 0.0
        %2346 = vmatmul.mubr.f32.gmra.mrb[0].mxu0 %v1682
        %v2347 = vpop.f32.mrb[0].mxu0
        %v2348 = vadd.f32 0.0, %v2347
        %v2349 = vpop.f32.mrb[0].mxu0
        %2350 = vmatprep.mubr.f32.mxu0 0.0
        %2351 = vmatmul.mubr.f32.gmra.mrb[0].mxu0 %v1685
        %v2352 = vpop.f32.mrb[0].mxu0
        %v2353 = vadd.f32 0.0, %v2352
        %v2354 = vpop.f32.mrb[0].mxu0
        %2355 = vmatprep.mubr.f32.mxu0 0.0
        %2356 = vmatmul.mubr.f32.gmra.mrb[0].mxu0 %v1688
        %v2357 = vpop.f32.mrb[0].mxu0
        %v2358 = vadd.f32 0.0, %v2357
        %v2359 = vpop.f32.mrb[0].mxu0
        %2360 = vmatprep.mubr.f32.mxu0 0.0
        %2361 = vmatmul.mubr.f32.gmra.mrb[0].mxu0 %v1691
        %v2362 = vpop.f32.mrb[0].mxu0
        %v2363 = vadd.f32 0.0, %v2362
        %v2364 = vpop.f32.mrb[0].mxu0
        %2365 = vmatprep.mubr.f32.mxu0 0.0
        %2366 = vmatmul.mubr.f32.gmra.mrb[0].mxu0 %v1694
        %v2367 = vpop.f32.mrb[0].mxu0
        %v2368 = vadd.f32 0.0, %v2367
        %v2369 = vpop.f32.mrb[0].mxu0
        %2370 = vmatprep.mubr.f32.mxu0 0.0
        %2371 = vmatmul.mubr.f32.gmra.mrb[0].mxu0 %v1697
        %v2372 = vpop.f32.mrb[0].mxu0
        %v2373 = vadd.f32 0.0, %v2372
        %v2374 = vpop.f32.mrb[0].mxu0
        %2375 = vmatprep.mubr.f32.mxu0 0.0
        %2376 = vmatmul.mubr.f32.gmra.mrb[0].mxu0 %v1700
        %v2377 = vpop.f32.mrb[0].mxu0
        %v2378 = vadd.f32 0.0, %v2377
        %v2379 = vpop.f32.mrb[0].mxu0
        %2380 = vmatprep.mubr.f32.mxu0 0.0
        %2381 = vmatmul.mubr.f32.gmra.mrb[0].mxu0 %v1703
        %v2382 = vpop.f32.mrb[0].mxu0
        %v2383 = vadd.f32 0.0, %v2382
        %v2384 = vpop.f32.mrb[0].mxu0
        %2385 = vmatprep.mubr.f32.mxu0 0.0
        %2386 = vmatmul.mubr.f32.gmra.mrb[0].mxu0 %v1706
        %v2387 = vpop.f32.mrb[0].mxu0
        %v2388 = vadd.f32 0.0, %v2387
        %v2389 = vpop.f32.mrb[0].mxu0
        %2390 = vmatprep.mubr.f32.mxu0 0.0
        %2391 = vmatmul.mubr.f32.gmra.mrb[0].mxu0 %v1709
        %v2392 = vpop.f32.mrb[0].mxu0
        %v2393 = vadd.f32 0.0, %v2392
        %v2394 = vpop.f32.mrb[0].mxu0
        %2395 = vmatprep.mubr.f32.mxu0 0.0
        %2396 = vmatmul.mubr.f32.gmra.mrb[0].mxu0 %v1712
        %v2397 = vpop.f32.mrb[0].mxu0
        %v2398 = vadd.f32 0.0, %v2397
        %v2399 = vpop.f32.mrb[0].mxu0
        %2400 = vmatprep.mubr.f32.mxu0 0.0
        %2401 = vmatmul.mubr.f32.gmra.mrb[0].mxu0 %v1715
        %v2402 = vpop.f32.mrb[0].mxu0
        %v2403 = vadd.f32 0.0, %v2402
        %v2404 = vpop.f32.mrb[0].mxu0
        %2405 = vmatprep.mubr.f32.mxu0 0.0
        %2406 = vmatmul.mubr.f32.gmra.mrb[0].mxu0 %v1718
        %v2407 = vpop.f32.mrb[0].mxu0
        %v2408 = vadd.f32 0.0, %v2407
        %v2409 = vpop.f32.mrb[0].mxu0
        %2410 = vmatprep.mubr.f32.mxu0 0.0
        %2411 = vmatmul.mubr.f32.gmra.mrb[0].mxu0 %v1721
        %v2412 = vpop.f32.mrb[0].mxu0
        %v2413 = vadd.f32 0.0, %v2412
        %v2414 = vpop.f32.mrb[0].mxu0
        %2415 = vmatprep.mubr.f32.mxu0 0.0
        %2416 = vmatmul.mubr.f32.gmra.mrb[0].mxu0 %v1724
        %v2417 = vpop.f32.mrb[0].mxu0
        %v2418 = vadd.f32 0.0, %v2417
        %v2419 = vpop.f32.mrb[0].mxu0
        %2420 = vmatprep.mubr.f32.mxu0 0.0
        %2421 = vmatmul.mubr.f32.gmra.mrb[0].mxu0 %v1727
        %v2422 = vpop.f32.mrb[0].mxu0
        %v2423 = vadd.f32 0.0, %v2422
        %v2424 = vpop.f32.mrb[0].mxu0
        %2425 = vmatprep.mubr.f32.mxu0 0.0
        %2426 = vmatmul.mubr.f32.gmra.mrb[0].mxu0 %v1730
        %v2427 = vpop.f32.mrb[0].mxu0
        %v2428 = vadd.f32 0.0, %v2427
        %v2429 = vpop.f32.mrb[0].mxu0
        %2430 = vmatprep.mubr.f32.mxu0 0.0
        %2431 = vmatmul.mubr.f32.gmra.mrb[0].mxu0 %v1733
        %v2432 = vpop.f32.mrb[0].mxu0
        %v2433 = vadd.f32 0.0, %v2432
        %v2434 = vpop.f32.mrb[0].mxu0
        %2435 = vmatprep.mubr.f32.mxu0 0.0
        %2436 = vmatmul.mubr.f32.gmra.mrb[0].mxu0 %v1736
        %v2437 = vpop.f32.mrb[0].mxu0
        %v2438 = vadd.f32 0.0, %v2437
        %v2439 = vpop.f32.mrb[0].mxu0
        %2440 = vmatprep.mubr.f32.mxu0 0.0
        %2441 = vmatmul.mubr.f32.gmra.mrb[0].mxu0 %v1739
        %v2442 = vpop.f32.mrb[0].mxu0
        %v2443 = vadd.f32 0.0, %v2442
        %v2444 = vpop.f32.mrb[0].mxu0
        %2445 = vdwg.mxu0
        %v2446 = vadd.f32 %v1186, %v1808
        %v2447 = vadd.f32 %v1187, %v1813
        %v2448 = vadd.f32 %v1188, %v1818
        %v2449 = vadd.f32 %v1189, %v1823
        %v2450 = vadd.f32 %v1190, %v1828
        %v2451 = vadd.f32 %v1191, %v1833
        %v2452 = vadd.f32 %v1192, %v1838
        %v2453 = vadd.f32 %v1193, %v1843
        %v2454 = vadd.f32 %v1194, %v1848
        %v2455 = vadd.f32 %v1195, %v1853
        %v2456 = vadd.f32 %v1196, %v1858
        %v2457 = vadd.f32 %v1197, %v1863
        %v2458 = vadd.f32 %v1198, %v1868
        %v2459 = vadd.f32 %v1199, %v1873
        %v2460 = vadd.f32 %v1200, %v1878
        %v2461 = vadd.f32 %v1201, %v1883
        %v2462 = vmax.f32 %v2446, 0.0
        %v2463 = vmax.f32 %v2447, 0.0
        %v2464 = vmax.f32 %v2448, 0.0
        %v2465 = vmax.f32 %v2449, 0.0
        %v2466 = vmax.f32 %v2450, 0.0
        %v2467 = vmax.f32 %v2451, 0.0
        %v2468 = vmax.f32 %v2452, 0.0
        %v2469 = vmax.f32 %v2453, 0.0
        %v2470 = vmax.f32 %v2454, 0.0
        %v2471 = vmax.f32 %v2455, 0.0
        %v2472 = vmax.f32 %v2456, 0.0
        %v2473 = vmax.f32 %v2457, 0.0
        %v2474 = vmax.f32 %v2458, 0.0
        %v2475 = vmax.f32 %v2459, 0.0
        %v2476 = vmax.f32 %v2460, 0.0
        %v2477 = vmax.f32 %v2461, 0.0
        %v2478 = vadd.f32 %v1186, %v1888
        %v2479 = vadd.f32 %v1187, %v1893
        %v2480 = vadd.f32 %v1188, %v1898
        %v2481 = vadd.f32 %v1189, %v1903
        %v2482 = vadd.f32 %v1190, %v1908
        %v2483 = vadd.f32 %v1191, %v1913
        %v2484 = vadd.f32 %v1192, %v1918
        %v2485 = vadd.f32 %v1193, %v1923
        %v2486 = vadd.f32 %v1194, %v1928
        %v2487 = vadd.f32 %v1195, %v1933
        %v2488 = vadd.f32 %v1196, %v1938
        %v2489 = vadd.f32 %v1197, %v1943
        %v2490 = vadd.f32 %v1198, %v1948
        %v2491 = vadd.f32 %v1199, %v1953
        %v2492 = vadd.f32 %v1200, %v1958
        %v2493 = vadd.f32 %v1201, %v1963
        %v2494 = vmax.f32 %v2478, 0.0
        %v2495 = vmax.f32 %v2479, 0.0
        %v2496 = vmax.f32 %v2480, 0.0
        %v2497 = vmax.f32 %v2481, 0.0
        %v2498 = vmax.f32 %v2482, 0.0
        %v2499 = vmax.f32 %v2483, 0.0
        %v2500 = vmax.f32 %v2484, 0.0
        %v2501 = vmax.f32 %v2485, 0.0
        %v2502 = vmax.f32 %v2486, 0.0
        %v2503 = vmax.f32 %v2487, 0.0
        %v2504 = vmax.f32 %v2488, 0.0
        %v2505 = vmax.f32 %v2489, 0.0
        %v2506 = vmax.f32 %v2490, 0.0
        %v2507 = vmax.f32 %v2491, 0.0
        %v2508 = vmax.f32 %v2492, 0.0
        %v2509 = vmax.f32 %v2493, 0.0
        %v2510 = vmax.f32 %v2462, %v2494
        %v2511 = vmax.f32 %v2463, %v2495
        %v2512 = vmax.f32 %v2464, %v2496
        %v2513 = vmax.f32 %v2465, %v2497
        %v2514 = vmax.f32 %v2466, %v2498
        %v2515 = vmax.f32 %v2467, %v2499
        %v2516 = vmax.f32 %v2468, %v2500
        %v2517 = vmax.f32 %v2469, %v2501
        %v2518 = vmax.f32 %v2470, %v2502
        %v2519 = vmax.f32 %v2471, %v2503
        %v2520 = vmax.f32 %v2472, %v2504
        %v2521 = vmax.f32 %v2473, %v2505
        %v2522 = vmax.f32 %v2474, %v2506
        %v2523 = vmax.f32 %v2475, %v2507
        %v2524 = vmax.f32 %v2476, %v2508
        %v2525 = vmax.f32 %v2477, %v2509
        %v2526 = vadd.f32 %v1186, %v1968
        %v2527 = vadd.f32 %v1187, %v1973
        %v2528 = vadd.f32 %v1188, %v1978
        %v2529 = vadd.f32 %v1189, %v1983
        %v2530 = vadd.f32 %v1190, %v1988
        %v2531 = vadd.f32 %v1191, %v1993
        %v2532 = vadd.f32 %v1192, %v1998
        %v2533 = vadd.f32 %v1193, %v2003
        %v2534 = vadd.f32 %v1194, %v2008
        %v2535 = vadd.f32 %v1195, %v2013
        %v2536 = vadd.f32 %v1196, %v2018
        %v2537 = vadd.f32 %v1197, %v2023
        %v2538 = vadd.f32 %v1198, %v2028
        %v2539 = vadd.f32 %v1199, %v2033
        %v2540 = vadd.f32 %v1200, %v2038
        %v2541 = vadd.f32 %v1201, %v2043
        %v2542 = vmax.f32 %v2526, 0.0
        %v2543 = vmax.f32 %v2527, 0.0
        %v2544 = vmax.f32 %v2528, 0.0
        %v2545 = vmax.f32 %v2529, 0.0
        %v2546 = vmax.f32 %v2530, 0.0
        %v2547 = vmax.f32 %v2531, 0.0
        %v2548 = vmax.f32 %v2532, 0.0
        %v2549 = vmax.f32 %v2533, 0.0
        %v2550 = vmax.f32 %v2534, 0.0
        %v2551 = vmax.f32 %v2535, 0.0
        %v2552 = vmax.f32 %v2536, 0.0
        %v2553 = vmax.f32 %v2537, 0.0
        %v2554 = vmax.f32 %v2538, 0.0
        %v2555 = vmax.f32 %v2539, 0.0
        %v2556 = vmax.f32 %v2540, 0.0
        %v2557 = vmax.f32 %v2541, 0.0
        %v2558 = vmax.f32 %v2510, %v2542
        %v2559 = vmax.f32 %v2511, %v2543
        %v2560 = vmax.f32 %v2512, %v2544
        %v2561 = vmax.f32 %v2513, %v2545
        %v2562 = vmax.f32 %v2514, %v2546
        %v2563 = vmax.f32 %v2515, %v2547
        %v2564 = vmax.f32 %v2516, %v2548
        %v2565 = vmax.f32 %v2517, %v2549
        %v2566 = vmax.f32 %v2518, %v2550
        %v2567 = vmax.f32 %v2519, %v2551
        %v2568 = vmax.f32 %v2520, %v2552
        %v2569 = vmax.f32 %v2521, %v2553
        %v2570 = vmax.f32 %v2522, %v2554
        %v2571 = vmax.f32 %v2523, %v2555
        %v2572 = vmax.f32 %v2524, %v2556
        %v2573 = vmax.f32 %v2525, %v2557
        %v2574 = vadd.f32 %v1186, %v2048
        %v2575 = vadd.f32 %v1187, %v2053
        %v2576 = vadd.f32 %v1188, %v2058
        %v2577 = vadd.f32 %v1189, %v2063
        %v2578 = vadd.f32 %v1190, %v2068
        %v2579 = vadd.f32 %v1191, %v2073
        %v2580 = vadd.f32 %v1192, %v2078
        %v2581 = vadd.f32 %v1193, %v2083
        %v2582 = vadd.f32 %v1194, %v2088
        %v2583 = vadd.f32 %v1195, %v2093
        %v2584 = vadd.f32 %v1196, %v2098
        %v2585 = vadd.f32 %v1197, %v2103
        %v2586 = vadd.f32 %v1198, %v2108
        %v2587 = vadd.f32 %v1199, %v2113
        %v2588 = vadd.f32 %v1200, %v2118
        %v2589 = vadd.f32 %v1201, %v2123
        %v2590 = vmax.f32 %v2574, 0.0
        %v2591 = vmax.f32 %v2575, 0.0
        %v2592 = vmax.f32 %v2576, 0.0
        %v2593 = vmax.f32 %v2577, 0.0
        %v2594 = vmax.f32 %v2578, 0.0
        %v2595 = vmax.f32 %v2579, 0.0
        %v2596 = vmax.f32 %v2580, 0.0
        %v2597 = vmax.f32 %v2581, 0.0
        %v2598 = vmax.f32 %v2582, 0.0
        %v2599 = vmax.f32 %v2583, 0.0
        %v2600 = vmax.f32 %v2584, 0.0
        %v2601 = vmax.f32 %v2585, 0.0
        %v2602 = vmax.f32 %v2586, 0.0
        %v2603 = vmax.f32 %v2587, 0.0
        %v2604 = vmax.f32 %v2588, 0.0
        %v2605 = vmax.f32 %v2589, 0.0
        %v2606 = vmax.f32 %v2558, %v2590
        %v2607 = vmax.f32 %v2559, %v2591
        %v2608 = vmax.f32 %v2560, %v2592
        %v2609 = vmax.f32 %v2561, %v2593
        %v2610 = vmax.f32 %v2562, %v2594
        %v2611 = vmax.f32 %v2563, %v2595
        %v2612 = vmax.f32 %v2564, %v2596
        %v2613 = vmax.f32 %v2565, %v2597
        %v2614 = vmax.f32 %v2566, %v2598
        %v2615 = vmax.f32 %v2567, %v2599
        %v2616 = vmax.f32 %v2568, %v2600
        %v2617 = vmax.f32 %v2569, %v2601
        %v2618 = vmax.f32 %v2570, %v2602
        %v2619 = vmax.f32 %v2571, %v2603
        %v2620 = vmax.f32 %v2572, %v2604
        %v2621 = vmax.f32 %v2573, %v2605
        %v2622 = vadd.f32 %v1186, %v2128
        %v2623 = vadd.f32 %v1187, %v2133
        %v2624 = vadd.f32 %v1188, %v2138
        %v2625 = vadd.f32 %v1189, %v2143
        %v2626 = vadd.f32 %v1190, %v2148
        %v2627 = vadd.f32 %v1191, %v2153
        %v2628 = vadd.f32 %v1192, %v2158
        %v2629 = vadd.f32 %v1193, %v2163
        %v2630 = vadd.f32 %v1194, %v2168
        %v2631 = vadd.f32 %v1195, %v2173
        %v2632 = vadd.f32 %v1196, %v2178
        %v2633 = vadd.f32 %v1197, %v2183
        %v2634 = vadd.f32 %v1198, %v2188
        %v2635 = vadd.f32 %v1199, %v2193
        %v2636 = vadd.f32 %v1200, %v2198
        %v2637 = vadd.f32 %v1201, %v2203
        %v2638 = vmax.f32 %v2622, 0.0
        %v2639 = vmax.f32 %v2623, 0.0
        %v2640 = vmax.f32 %v2624, 0.0
        %v2641 = vmax.f32 %v2625, 0.0
        %v2642 = vmax.f32 %v2626, 0.0
        %v2643 = vmax.f32 %v2627, 0.0
        %v2644 = vmax.f32 %v2628, 0.0
        %v2645 = vmax.f32 %v2629, 0.0
        %v2646 = vmax.f32 %v2630, 0.0
        %v2647 = vmax.f32 %v2631, 0.0
        %v2648 = vmax.f32 %v2632, 0.0
        %v2649 = vmax.f32 %v2633, 0.0
        %v2650 = vmax.f32 %v2634, 0.0
        %v2651 = vmax.f32 %v2635, 0.0
        %v2652 = vmax.f32 %v2636, 0.0
        %v2653 = vmax.f32 %v2637, 0.0
        %v2654 = vmax.f32 %v2606, %v2638
        %v2655 = vmax.f32 %v2607, %v2639
        %v2656 = vmax.f32 %v2608, %v2640
        %v2657 = vmax.f32 %v2609, %v2641
        %v2658 = vmax.f32 %v2610, %v2642
        %v2659 = vmax.f32 %v2611, %v2643
        %v2660 = vmax.f32 %v2612, %v2644
        %v2661 = vmax.f32 %v2613, %v2645
        %v2662 = vmax.f32 %v2614, %v2646
        %v2663 = vmax.f32 %v2615, %v2647
        %v2664 = vmax.f32 %v2616, %v2648
        %v2665 = vmax.f32 %v2617, %v2649
        %v2666 = vmax.f32 %v2618, %v2650
        %v2667 = vmax.f32 %v2619, %v2651
        %v2668 = vmax.f32 %v2620, %v2652
        %v2669 = vmax.f32 %v2621, %v2653
        %v2670 = vadd.f32 %v1186, %v2208
        %v2671 = vadd.f32 %v1187, %v2213
        %v2672 = vadd.f32 %v1188, %v2218
        %v2673 = vadd.f32 %v1189, %v2223
        %v2674 = vadd.f32 %v1190, %v2228
        %v2675 = vadd.f32 %v1191, %v2233
        %v2676 = vadd.f32 %v1192, %v2238
        %v2677 = vadd.f32 %v1193, %v2243
        %v2678 = vadd.f32 %v1194, %v2248
        %v2679 = vadd.f32 %v1195, %v2253
        %v2680 = vadd.f32 %v1196, %v2258
        %v2681 = vadd.f32 %v1197, %v2263
        %v2682 = vadd.f32 %v1198, %v2268
        %v2683 = vadd.f32 %v1199, %v2273
        %v2684 = vadd.f32 %v1200, %v2278
        %v2685 = vadd.f32 %v1201, %v2283
        %v2686 = vmax.f32 %v2670, 0.0
        %v2687 = vmax.f32 %v2671, 0.0
        %v2688 = vmax.f32 %v2672, 0.0
        %v2689 = vmax.f32 %v2673, 0.0
        %v2690 = vmax.f32 %v2674, 0.0
        %v2691 = vmax.f32 %v2675, 0.0
        %v2692 = vmax.f32 %v2676, 0.0
        %v2693 = vmax.f32 %v2677, 0.0
        %v2694 = vmax.f32 %v2678, 0.0
        %v2695 = vmax.f32 %v2679, 0.0
        %v2696 = vmax.f32 %v2680, 0.0
        %v2697 = vmax.f32 %v2681, 0.0
        %v2698 = vmax.f32 %v2682, 0.0
        %v2699 = vmax.f32 %v2683, 0.0
        %v2700 = vmax.f32 %v2684, 0.0
        %v2701 = vmax.f32 %v2685, 0.0
        %v2702 = vmax.f32 %v2654, %v2686
        %v2703 = vmax.f32 %v2655, %v2687
        %v2704 = vmax.f32 %v2656, %v2688
        %v2705 = vmax.f32 %v2657, %v2689
        %v2706 = vmax.f32 %v2658, %v2690
        %v2707 = vmax.f32 %v2659, %v2691
        %v2708 = vmax.f32 %v2660, %v2692
        %v2709 = vmax.f32 %v2661, %v2693
        %v2710 = vmax.f32 %v2662, %v2694
        %v2711 = vmax.f32 %v2663, %v2695
        %v2712 = vmax.f32 %v2664, %v2696
        %v2713 = vmax.f32 %v2665, %v2697
        %v2714 = vmax.f32 %v2666, %v2698
        %v2715 = vmax.f32 %v2667, %v2699
        %v2716 = vmax.f32 %v2668, %v2700
        %v2717 = vmax.f32 %v2669, %v2701
        %v2718 = vadd.f32 %v1186, %v2288
        %v2719 = vadd.f32 %v1187, %v2293
        %v2720 = vadd.f32 %v1188, %v2298
        %v2721 = vadd.f32 %v1189, %v2303
        %v2722 = vadd.f32 %v1190, %v2308
        %v2723 = vadd.f32 %v1191, %v2313
        %v2724 = vadd.f32 %v1192, %v2318
        %v2725 = vadd.f32 %v1193, %v2323
        %v2726 = vadd.f32 %v1194, %v2328
        %v2727 = vadd.f32 %v1195, %v2333
        %v2728 = vadd.f32 %v1196, %v2338
        %v2729 = vadd.f32 %v1197, %v2343
        %v2730 = vadd.f32 %v1198, %v2348
        %v2731 = vadd.f32 %v1199, %v2353
        %v2732 = vadd.f32 %v1200, %v2358
        %v2733 = vadd.f32 %v1201, %v2363
        %v2734 = vmax.f32 %v2718, 0.0
        %v2735 = vmax.f32 %v2719, 0.0
        %v2736 = vmax.f32 %v2720, 0.0
        %v2737 = vmax.f32 %v2721, 0.0
        %v2738 = vmax.f32 %v2722, 0.0
        %v2739 = vmax.f32 %v2723, 0.0
        %v2740 = vmax.f32 %v2724, 0.0
        %v2741 = vmax.f32 %v2725, 0.0
        %v2742 = vmax.f32 %v2726, 0.0
        %v2743 = vmax.f32 %v2727, 0.0
        %v2744 = vmax.f32 %v2728, 0.0
        %v2745 = vmax.f32 %v2729, 0.0
        %v2746 = vmax.f32 %v2730, 0.0
        %v2747 = vmax.f32 %v2731, 0.0
        %v2748 = vmax.f32 %v2732, 0.0
        %v2749 = vmax.f32 %v2733, 0.0
        %v2750 = vmax.f32 %v2702, %v2734
        %v2751 = vmax.f32 %v2703, %v2735
        %v2752 = vmax.f32 %v2704, %v2736
        %v2753 = vmax.f32 %v2705, %v2737
        %v2754 = vmax.f32 %v2706, %v2738
        %v2755 = vmax.f32 %v2707, %v2739
        %v2756 = vmax.f32 %v2708, %v2740
        %v2757 = vmax.f32 %v2709, %v2741
        %v2758 = vmax.f32 %v2710, %v2742
        %v2759 = vmax.f32 %v2711, %v2743
        %v2760 = vmax.f32 %v2712, %v2744
        %v2761 = vmax.f32 %v2713, %v2745
        %v2762 = vmax.f32 %v2714, %v2746
        %v2763 = vmax.f32 %v2715, %v2747
        %v2764 = vmax.f32 %v2716, %v2748
        %v2765 = vmax.f32 %v2717, %v2749
        %v2766 = vadd.f32 %v1186, %v2368
        %v2767 = vadd.f32 %v1187, %v2373
        %v2768 = vadd.f32 %v1188, %v2378
        %v2769 = vadd.f32 %v1189, %v2383
        %v2770 = vadd.f32 %v1190, %v2388
        %v2771 = vadd.f32 %v1191, %v2393
        %v2772 = vadd.f32 %v1192, %v2398
        %v2773 = vadd.f32 %v1193, %v2403
        %v2774 = vadd.f32 %v1194, %v2408
        %v2775 = vadd.f32 %v1195, %v2413
        %v2776 = vadd.f32 %v1196, %v2418
        %v2777 = vadd.f32 %v1197, %v2423
        %v2778 = vadd.f32 %v1198, %v2428
        %v2779 = vadd.f32 %v1199, %v2433
        %v2780 = vadd.f32 %v1200, %v2438
        %v2781 = vadd.f32 %v1201, %v2443
        %v2782 = vmax.f32 %v2766, 0.0
        %v2783 = vmax.f32 %v2767, 0.0
        %v2784 = vmax.f32 %v2768, 0.0
        %v2785 = vmax.f32 %v2769, 0.0
        %v2786 = vmax.f32 %v2770, 0.0
        %v2787 = vmax.f32 %v2771, 0.0
        %v2788 = vmax.f32 %v2772, 0.0
        %v2789 = vmax.f32 %v2773, 0.0
        %v2790 = vmax.f32 %v2774, 0.0
        %v2791 = vmax.f32 %v2775, 0.0
        %v2792 = vmax.f32 %v2776, 0.0
        %v2793 = vmax.f32 %v2777, 0.0
        %v2794 = vmax.f32 %v2778, 0.0
        %v2795 = vmax.f32 %v2779, 0.0
        %v2796 = vmax.f32 %v2780, 0.0
        %v2797 = vmax.f32 %v2781, 0.0
        %v2798 = vmax.f32 %v2750, %v2782
        %v2799 = vmax.f32 %v2751, %v2783
        %v2800 = vmax.f32 %v2752, %v2784
        %v2801 = vmax.f32 %v2753, %v2785
        %v2802 = vmax.f32 %v2754, %v2786
        %v2803 = vmax.f32 %v2755, %v2787
        %v2804 = vmax.f32 %v2756, %v2788
        %v2805 = vmax.f32 %v2757, %v2789
        %v2806 = vmax.f32 %v2758, %v2790
        %v2807 = vmax.f32 %v2759, %v2791
        %v2808 = vmax.f32 %v2760, %v2792
        %v2809 = vmax.f32 %v2761, %v2793
        %v2810 = vmax.f32 %v2762, %v2794
        %v2811 = vmax.f32 %v2763, %v2795
        %v2812 = vmax.f32 %v2764, %v2796
        %v2813 = vmax.f32 %v2765, %v2797
        %v2814 = vadd.f32 %v2798, %v1209
        %v2815 = vadd.f32 %v2799, %v1210
        %v2816 = vadd.f32 %v2800, %v1211
        %v2817 = vadd.f32 %v2801, %v1212
        %v2818 = vadd.f32 %v2802, %v1213
        %v2819 = vadd.f32 %v2803, %v1214
        %v2820 = vadd.f32 %v2804, %v1215
        %v2821 = vadd.f32 %v2805, %v1216
        %v2822 = vadd.f32 %v2806, %v1217
        %v2823 = vadd.f32 %v2807, %v1218
        %v2824 = vadd.f32 %v2808, %v1219
        %v2825 = vadd.f32 %v2809, %v1220
        %v2826 = vadd.f32 %v2810, %v1221
        %v2827 = vadd.f32 %v2811, %v1222
        %v2828 = vadd.f32 %v2812, %v1223
        %v2829 = vadd.f32 %v2813, %v1224
        %2830 = vst [vmem:[%s808] sm:$0xff] %v2814
        %2831 = vst [vmem:[%s808 + $0x8] sm:$0xff] %v2815
        %2832 = vst [vmem:[%s808 + $0x10] sm:$0xff] %v2816
        %2833 = vst [vmem:[%s808 + $0x18] sm:$0xff] %v2817
        %2834 = vst [vmem:[%s808 + $0x20] sm:$0xff] %v2818
        %2835 = vst [vmem:[%s808 + $0x28] sm:$0xff] %v2819
        %2836 = vst [vmem:[%s808 + $0x30] sm:$0xff] %v2820
        %2837 = vst [vmem:[%s808 + $0x38] sm:$0xff] %v2821
        %2838 = vst [vmem:[%s808 + $0x40] sm:$0xff] %v2822
        %2839 = vst [vmem:[%s808 + $0x48] sm:$0xff] %v2823
        %2840 = vst [vmem:[%s808 + $0x50] sm:$0xff] %v2824
        %2841 = vst [vmem:[%s808 + $0x58] sm:$0xff] %v2825
        %2842 = vst [vmem:[%s808 + $0x60] sm:$0xff] %v2826
        %2843 = vst [vmem:[%s808 + $0x68] sm:$0xff] %v2827
        %2844 = vst [vmem:[%s808 + $0x70] sm:$0xff] %v2828
        %2845 = vst [vmem:[%s808 + $0x78] sm:$0xff] %v2829
        %s2846 = sand.u32 %s164, 1
        %s2847 = scalar_lea.sflag [#allocation4], %s2846
        %s2848 = sand.u32 %s164, 1
        %s2849 = smul.addr %s2848, 128
        %s2850 = scalar_lea.vmem [#allocation3], %s2849
        // Predicated region
        $region83: #{tpu_custom_call.1} parent=77 // pred_check
          %p2851 = pneg %p174
        $region84: #{tpu_custom_call.1} parent=77 // pred_check_branch
          %2853 = sbr.rel (%p2851) target = $region86
        $region85: #{tpu_custom_call.1} parent=77 // pred_region
          %s2854 = smul.u32 16, %s20
          %s2856 = ssub.s32 2048, 2048
          %2857 = vsyncadd %s2847, %s2856
          %s2858 = smul.addr %s2854, 128
          %s2859 = scalar_lea.hbm %s6, %s2858
          %s2860 = sshll.u32 %s2850, 4
          %s2861 = int_to_ptr.vmem [resolvable:$true] %s2860
          %2866 = dma.vmem_to_hbm [thread:$0]  %s2861, 2048, %s2859, %s2847, 128, 128, 8
        $region86: #{tpu_custom_call.1} parent=77 // pred_fallthru
          _
      $region78: #{tpu_custom_call.1} parent=5 // pred_fallthru
        _
      %p2867 = scmp.le.s32.totalorder 2, %s15
      // Predicated region
      $region87: #{tpu_custom_call.1} parent=5 // pred_check
        %p2868 = pneg %p2867
      $region88: #{tpu_custom_call.1} parent=5 // pred_check_branch
        %2870 = sbr.rel (%p2868) target = $region90
      $region89: #{tpu_custom_call.1} parent=5 // pred_region
        %s2871 = ssub.s32 %s15, 2
        // Predicated region
        $region91: #{tpu_custom_call.1} parent=89 // pred_check
          %p2872 = pneg %p180
        $region92: #{tpu_custom_call.1} parent=89 // pred_check_branch
          %2874 = sbr.rel (%p2872) target = $region94
        $region93: #{tpu_custom_call.1} parent=89 // pred_region
          %s2875 = sand.u32 %s165, 1
          %s2876 = scalar_lea.sflag [#allocation4], %s2875
          %s2877 = sand.u32 %s165, 1
          %s2878 = smul.addr %s2877, 128
          %s2879 = scalar_lea.vmem [#allocation3], %s2878
          %2880 = dma.done %s2876, 2048
        $region94: #{tpu_custom_call.1} parent=89 // pred_fallthru
          _
      $region90: #{tpu_custom_call.1} parent=5 // pred_fallthru
        _
    $region6: #{tpu_custom_call.1} parent=1 // loop_footer
      %s19 = sadd.s32 1, %s15
    $region7: #{tpu_custom_call.1} parent=1 // loop_footer_branch
      %14 = sbr.rel target = $region3
    $region8: #{tpu_custom_call.1} parent=1 // loop_exit
      _
    %2881 = vsyncpa [#allocation4], 1
    %s2882 = scalar_lea.sflag [#allocation4], 1
    %2883 = vsyncpa %s2882, 1

</llo_original>
